<compile_context>
chip_gen: v5e
topology: v5e:2x2
jax: 0.10.0
libtpu: 0.0.40
codegen_flags: <defaults>
</compile_context>

<pallas_src>
import functools

import jax
import jax.numpy as jnp
from jax import lax
from jax.experimental import pallas as pl
from jax.experimental.pallas import tpu as pltpu


# ----------------------------------------------------------------------------
# In-kernel depthwise helper: KxK taps as lane rolls + precomputed edge masks
# ----------------------------------------------------------------------------
def _dw_taps(y, wd_ref, mask_ref, *, ksize, h, w):
    """Depthwise KxK conv, stride 1, zero 'same' padding, on a (R, H*W) f32 tile.

    y:        (R, H*W) activations (lane axis = flattened spatial, one image per
              row group; lane rolls never mix rows so sublane-stacked images are
              handled for free).
    wd_ref:   (R, K*K) per-row taps (BN scale pre-folded).
    mask_ref: (K*K, H*W) constant 0/1 zero-padding edge masks (precomputed).
    """
    r, hw = y.shape
    pad = ksize // 2
    acc = jnp.zeros((r, hw), jnp.float32)
    for kh in range(ksize):
        for kw in range(ksize):
            dh = kh - pad
            dwd = kw - pad
            off = dh * w + dwd                    # flat-lane source offset
            t = kh * ksize + kw
            tap = wd_ref[:, t:t + 1]              # (R, 1), broadcasts over lanes
            # shifted[:, l] = y[:, (l + off) % hw]   (jnp.roll semantics)
            shifted = y if off == 0 else pltpu.roll(y, (-off) % hw, axis=1)
            contrib = shifted * tap
            if not (dh == 0 and dwd == 0):
                contrib = contrib * mask_ref[t:t + 1, :]
            acc = acc + contrib
    return acc


# ----------------------------------------------------------------------------
# Fused block kernels (one grid step == `block_batch` images, sublane-stacked)
# ----------------------------------------------------------------------------
def _shuffle_block_s1_kernel(x_ref, w1_ref, b1_ref, wd_ref, w3_ref, b3_ref,
                             selp_ref, mask_ref, o_ref, *, ksize, h, w):
    """stride=1.  x_ref: (B*2*inp, HW)  ->  o_ref: (B*oup, HW)."""
    xx = x_ref[...].astype(jnp.float32)
    xb = xx.astype(jnp.bfloat16)
    # branch_main: 1x1 conv (+BN+ReLU) -> depthwise KxK (+BN) -> 1x1 (+BN+ReLU)
    # (channel_shuffle's odd-channel pick folded into w1; BN folded; dw bias b2
    #  folded through w3 into b3).
    y = jnp.dot(w1_ref[...], xb, preferred_element_type=jnp.float32) + b1_ref[...]
    y = jnp.maximum(y, 0.0)
    y = _dw_taps(y, wd_ref, mask_ref, ksize=ksize, h=h, w=w)
    main = jnp.dot(w3_ref[...], y.astype(jnp.bfloat16),
                   preferred_element_type=jnp.float32) + b3_ref[...]
    main = jnp.maximum(main, 0.0)                 # proj rows are exactly 0 here
    # x_proj (even input channels) placed into output rows [b*oup, b*oup+inp):
    # kept f32 so the identity pass-through is exact.
    proj = jnp.dot(selp_ref[...], xx, preferred_element_type=jnp.float32)
    o_ref[...] = (main + proj).astype(o_ref.dtype)   # fused channel concat


def _shuffle_block_s2_kernel(x_ref, w1_ref, b1_ref, wd_ref, wo_ref, bo_ref,
                             sub_ref, mask_ref, o_ref, *, ksize, h, w):
    """stride=2.  x_ref: (B*inp, HW)  ->  o_ref: (B*oup, HW/4)."""
    xx = x_ref[...].astype(jnp.float32)
    y = jnp.dot(w1_ref[...], xx.astype(jnp.bfloat16),
                preferred_element_type=jnp.float32) + b1_ref[...]
    y = jnp.maximum(y, 0.0)                       # (B*mid, HW)
    # ONE shared depthwise pass over [branch_main act ; branch_proj input].
    stack = jnp.concatenate([y, xx], axis=0)      # (B*(mid+inp), HW)
    d = _dw_taps(stack, wd_ref, mask_ref, ksize=ksize, h=h, w=w)
    # ONE stride-2 spatial-subsample matmul for both branches.
    s = jnp.dot(d.astype(jnp.bfloat16), sub_ref[...],
                preferred_element_type=jnp.float32)          # (B*(mid+inp), HW/4)
    # ONE fused output matmul (both 1x1 convs + BN + channel concat) + one ReLU
    # (both branches end in ReLU for stride=2, so a single ReLU is exact).
    out = jnp.dot(wo_ref[...], s.astype(jnp.bfloat16),
                  preferred_element_type=jnp.float32) + bo_ref[...]
    o_ref[...] = jnp.maximum(out, 0.0).astype(o_ref.dtype)


# ----------------------------------------------------------------------------
# Wrapper
# ----------------------------------------------------------------------------
def pick_block_batch(n, c_in, oup, *, sublane_cap=128):
    """Images per grid step: fill the MXU sublane dim (<=128 rows is safe on
    v5e/v6e/v7x) while keeping >=2 grid steps when the batch allows (so v7x's
    two TensorCores both get work) and keeping blocked row counts 8-aligned."""
    divisors = [d for d in range(1, n + 1) if n % d == 0]

    def aligned(d):
        return d == n or ((d * c_in) % 8 == 0 and (d * oup) % 8 == 0)

    cands = [d for d in divisors if aligned(d) and d * max(c_in, oup) <= sublane_cap]
    if not cands:
        cands = [d for d in divisors if aligned(d)] or [n]
    multi = [d for d in cands if n // d >= 2]
    return max(multi) if multi else max(cands)


def shufflenet_forward(params, old_x, *, stride, ksize, block_batch):
    """params: from fuse_params(); old_x: NCHW. Returns NCHW."""
    assert stride in (1, 2)
    n, c_in, h, w = old_x.shape
    hw = h * w
    b = block_batch
    assert n % b == 0
    grid = n // b
    oup = (params["b3"] if stride == 1 else params["bo"]).shape[0] // b

    x2 = old_x.reshape(n * c_in, hw)              # NCHW -> (N*C, H*W), no copy

    # Constant (K*K, HW) zero-padding edge masks (hoisted out of the kernel,
    # constant-folded by XLA under jit).
    pad = ksize // 2
    pos = jnp.arange(hw)
    hh, ww = pos // w, pos % w
    rows = []
    for kh in range(ksize):
        for kw in range(ksize):
            dh, dwd = kh - pad, kw - pad
            rows.append(((hh + dh >= 0) & (hh + dh < h) &
                         (ww + dwd >= 0) & (ww + dwd < w)).astype(jnp.float32))
    mask = jnp.stack(rows, axis=0)                # (K*K, HW)

    if stride == 1:
        out_hw = hw
        kern = functools.partial(_shuffle_block_s1_kernel, ksize=ksize, h=h, w=w)
        operands = (x2, params["w1"], params["b1"], params["wd"],
                    params["w3"], params["b3"], params["selp"], mask)
    else:
        assert h % 2 == 0 and w % 2 == 0
        ho, wo = h // 2, w // 2
        out_hw = ho * wo
        # stride-2 spatial subsample as a (HW, Ho*Wo) 0/1 selection matrix.
        dst = jnp.arange(out_hw)
        src = (dst // wo) * (2 * w) + (dst % wo) * 2
        sub = (jnp.arange(hw)[:, None] == src[None, :]).astype(jnp.bfloat16)
        kern = functools.partial(_shuffle_block_s2_kernel, ksize=ksize, h=h, w=w)
        operands = (x2, params["w1"], params["b1"], params["wd"],
                    params["wo"], params["bo"], sub, mask)

    in_specs = [pl.BlockSpec((b * c_in, hw), lambda i: (i, 0))]
    in_specs += [pl.BlockSpec(a.shape, lambda i, _nd=a.ndim: (0,) * _nd)
                 for a in operands[1:]]

    out = pl.pallas_call(
        kern,
        out_shape=jax.ShapeDtypeStruct((n * oup, out_hw), old_x.dtype),
        grid=(grid,),
        in_specs=in_specs,
        out_specs=pl.BlockSpec((b * oup, out_hw), lambda i: (i, 0)),
        compiler_params=pltpu.CompilerParams(
            dimension_semantics=("parallel",)),   # batch-block axis -> 2 TCs
    )(*operands)

    if stride == 1:
        return out.reshape(n, oup, h, w)
    return out.reshape(n, oup, h // 2, w // 2)


# ----------------------------------------------------------------------------
# Parameter prep: fold eval-mode BN, channel_shuffle, dw-biases and the concat;
# expand to block-diagonal weights for `block_batch` sublane-stacked images.
# ----------------------------------------------------------------------------
def _block_diag(wm, b):
    m, k = wm.shape
    eye = jnp.eye(b, dtype=wm.dtype)
    return (eye[:, None, :, None] * wm[None, :, None, :]).reshape(b * m, b * k)


def fuse_params(raw, *, stride, ksize, block_batch):
    b = block_batch
    inp = raw["w1"].shape[0]
    mid = raw["w1"].shape[1]
    outputs = raw["w3"].shape[1]
    oup = inp + outputs
    k2 = ksize * ksize

    w1t = raw["w1"].T * raw["s1"][:, None]                        # (mid, inp)
    wdf = raw["wd"].reshape(k2, mid).T * raw["s2"][:, None]       # (mid, k2)
    w3t = raw["w3"].T * raw["s3"][:, None]                        # (outputs, mid)
    b3f = w3t @ raw["b2"] + raw["b3"]                             # fold dw-BN bias

    f = {}
    if stride == 1:
        cin = 2 * inp
        # branch_main consumes odd input channels -> scatter into odd columns.
        w1_img = jnp.zeros((mid, cin), jnp.float32).at[:, 1::2].set(w1t)
        # x_proj = even input channels placed into output rows [0, inp).
        selp_img = jnp.zeros((oup, cin), jnp.float32)
        selp_img = selp_img.at[jnp.arange(inp), 2 * jnp.arange(inp)].set(1.0)
        w3_img = jnp.zeros((oup, mid), jnp.float32).at[inp:, :].set(w3t)
        b3_img = jnp.zeros((oup,), jnp.float32).at[inp:].set(b3f)
        f["w1"] = _block_diag(w1_img, b).astype(jnp.bfloat16)
        f["b1"] = jnp.tile(raw["b1"].reshape(mid, 1), (b, 1))
        f["wd"] = jnp.tile(wdf, (b, 1))
        f["w3"] = _block_diag(w3_img, b).astype(jnp.bfloat16)
        f["b3"] = jnp.tile(b3_img.reshape(oup, 1), (b, 1))
        f["selp"] = _block_diag(selp_img, b)      # f32: exact pass-through
    else:
        wpdf = raw["wpd"].reshape(k2, inp).T * raw["sp1"][:, None]  # (inp, k2)
        wpt = raw["wp"].T * raw["sp2"][:, None]                     # (inp, inp)
        bpf = wpt @ raw["bp1"] + raw["bp2"]                         # fold dw-BN bias
        wmain_img = jnp.zeros((oup, mid), jnp.float32).at[inp:, :].set(w3t)
        wproj_img = jnp.zeros((oup, inp), jnp.float32).at[:inp, :].set(wpt)
        bo_img = jnp.zeros((oup,), jnp.float32).at[:inp].set(bpf).at[inp:].set(b3f)
        f["w1"] = _block_diag(w1t, b).astype(jnp.bfloat16)
        f["b1"] = jnp.tile(raw["b1"].reshape(mid, 1), (b, 1))
        # per-row dw taps for the stacked [main(B*mid) ; proj(B*inp)] tile
        f["wd"] = jnp.concatenate(
            [jnp.tile(wdf, (b, 1)), jnp.tile(wpdf, (b, 1))], axis=0)
        # single output matmul: columns [0, B*mid) read main rows, the rest proj
        f["wo"] = jnp.concatenate(
            [_block_diag(wmain_img, b), _block_diag(wproj_img, b)],
            axis=1).astype(jnp.bfloat16)
        f["bo"] = jnp.tile(bo_img.reshape(oup, 1), (b, 1))
    return f


# ----------------------------------------------------------------------------
# Deterministic raw-parameter initialization (PyTorch-equivalent structure)
# ----------------------------------------------------------------------------
def _fold_bn(key, c, eps=1e-5):
    k1, k2, k3, k4 = jax.random.split(key, 4)
    gamma = 1.0 + 0.1 * jax.random.normal(k1, (c,), jnp.float32)
    beta = 0.1 * jax.random.normal(k2, (c,), jnp.float32)
    mean = 0.1 * jax.random.normal(k3, (c,), jnp.float32)
    var = 1.0 + 0.1 * jax.random.uniform(k4, (c,), jnp.float32)
    scale = gamma / jnp.sqrt(var + eps)
    bias = beta - mean * scale
    return scale, bias


def init_params(key, inp, oup, mid, ksize, stride):
    # TODO(synk): BatchNorm is folded in eval (inference) mode only; training-mode
    # batch statistics are not implemented.
    outputs = oup - inp
    keys = jax.random.split(key, 10)
    p = {}
    p["w1"] = jax.random.normal(keys[0], (inp, mid), jnp.float32) / jnp.sqrt(inp)
    p["s1"], p["b1"] = _fold_bn(keys[1], mid)
    p["wd"] = jax.random.normal(keys[2], (ksize, ksize, mid), jnp.float32) / ksize
    p["s2"], p["b2"] = _fold_bn(keys[3], mid)
    p["w3"] = jax.random.normal(keys[4], (mid, outputs), jnp.float32) / jnp.sqrt(mid)
    p["s3"], p["b3"] = _fold_bn(keys[5], outputs)
    if stride == 2:
        p["wpd"] = jax.random.normal(keys[6], (ksize, ksize, inp), jnp.float32) / ksize
        p["sp1"], p["bp1"] = _fold_bn(keys[7], inp)
        p["wp"] = jax.random.normal(keys[8], (inp, inp), jnp.float32) / jnp.sqrt(inp)
        p["sp2"], p["bp2"] = _fold_bn(keys[9], inp)
    return p


# ----------------------------------------------------------------------------
# Pure-JAX f32 reference (raw params) for correctness check
# ----------------------------------------------------------------------------
def _ref_pw(x, w, s, b, relu):
    y = jnp.einsum("nhwc,cd->nhwd", x, w, preferred_element_type=jnp.float32)
    y = y * s + b
    return jnp.maximum(y, 0.0) if relu else y


def _ref_dw(x, w_kkc, s, b, ksize, stride, relu):
    c = x.shape[-1]
    pad = ksize // 2
    y = lax.conv_general_dilated(
        x, w_kkc.reshape(ksize, ksize, 1, c),
        window_strides=(stride, stride), padding=[(pad, pad), (pad, pad)],
        dimension_numbers=("NHWC", "HWIO", "NHWC"), feature_group_count=c)
    y = y * s + b
    return jnp.maximum(y, 0.0) if relu else y


def _ref_forward(params, old_x, *, stride, ksize):
    x_nhwc = jnp.transpose(old_x, (0, 2, 3, 1))
    if stride == 1:
        x_proj, x = x_nhwc[..., 0::2], x_nhwc[..., 1::2]
    else:
        x_proj, x = x_nhwc, x_nhwc
    y = _ref_pw(x, params["w1"], params["s1"], params["b1"], True)
    y = _ref_dw(y, params["wd"], params["s2"], params["b2"], ksize, stride, False)
    y = _ref_pw(y, params["w3"], params["s3"], params["b3"], True)
    if stride == 2:
        p = _ref_dw(x_proj, params["wpd"], params["sp1"], params["bp1"], ksize, stride, False)
        p = _ref_pw(p, params["wp"], params["sp2"], params["bp2"], True)
    else:
        p = x_proj
    out = jnp.concatenate([p, y], axis=-1)
    return jnp.transpose(out, (0, 3, 1, 2))


# ----------------------------------------------------------------------------
if __name__ == "__main__":
    key = jax.random.PRNGKey(0)
    kx1, kx2, kp1, kp2 = jax.random.split(key, 4)

    inp, oup, mid, ksize = 4, 16, 8, 3
    n = 8                      # small batch; exercises block-diagonal packing

    # Tolerances: kernel uses bf16 MXU operands (f32 accumulation) vs f32 ref.
    ATOL, RTOL = 5e-2, 5e-2

    # --- stride=1 block: input has 2*inp channels (channel_shuffle halves it) ---
    x1 = jax.random.normal(kx1, (n, 2 * inp, 16, 16), jnp.float32)     # NCHW
    raw1 = init_params(kp1, inp, oup, mid, ksize, stride=1)
    bb1 = pick_block_batch(n, 2 * inp, oup)
    fused1 = fuse_params(raw1, stride=1, ksize=ksize, block_batch=bb1)
    fwd1 = jax.jit(functools.partial(shufflenet_forward, stride=1, ksize=ksize,
                                     block_batch=bb1))
    out1 = jax.block_until_ready(fwd1(fused1, x1))
    ref1 = _ref_forward(raw1, x1, stride=1, ksize=ksize)
    assert out1.shape == (n, oup, 16, 16), out1.shape
    assert jnp.allclose(out1, ref1, atol=ATOL, rtol=RTOL), \
        float(jnp.max(jnp.abs(out1 - ref1)))

    # --- stride=2 block ---
    x2 = jax.random.normal(kx2, (n, inp, 16, 16), jnp.float32)         # NCHW
    raw2 = init_params(kp2, inp, oup, mid, ksize, stride=2)
    bb2 = pick_block_batch(n, inp, oup)
    fused2 = fuse_params(raw2, stride=2, ksize=ksize, block_batch=bb2)
    fwd2 = jax.jit(functools.partial(shufflenet_forward, stride=2, ksize=ksize,
                                     block_batch=bb2))
    out2 = jax.block_until_ready(fwd2(fused2, x2))
    ref2 = _ref_forward(raw2, x2, stride=2, ksize=ksize)
    assert out2.shape == (n, oup, 8, 8), out2.shape
    assert jnp.allclose(out2, ref2, atol=ATOL, rtol=RTOL), \
        float(jnp.max(jnp.abs(out2 - ref2)))

    print("KERNEL_OK")
</pallas_src>

<mosaic_0001>
module attributes {stable_mosaic.version = 11 : i64} {
  func.func @_shuffle_block_s1_kernel(%arg0: i32, %arg1: memref<32x256xf32, #tpu.memory_space<vmem>>, %arg2: memref<32x32xbf16, #tpu.memory_space<vmem>>, %arg3: memref<32x1xf32, #tpu.memory_space<vmem>>, %arg4: memref<32x9xf32, #tpu.memory_space<vmem>>, %arg5: memref<64x32xbf16, #tpu.memory_space<vmem>>, %arg6: memref<64x1xf32, #tpu.memory_space<vmem>>, %arg7: memref<64x32xf32, #tpu.memory_space<vmem>>, %arg8: memref<9x256xf32, #tpu.memory_space<vmem>>, %arg9: memref<64x256xf32, #tpu.memory_space<vmem>>) attributes {dimension_semantics = [#tpu.dimension_semantics<parallel>], iteration_bounds = array<i64: 2>, scalar_prefetch = 0 : i64, scratch_operands = 0 : i64, tpu.core_type = #tpu.core_type<tc>, window_params = [{transform_indices = @transform_0, window_bounds = array<i64: 32, 256>}, {pipeline_mode = #tpu.pipeline_mode<synchronous>, transform_indices = @transform_1, window_bounds = array<i64: 32, 32>}, {pipeline_mode = #tpu.pipeline_mode<synchronous>, transform_indices = @transform_2, window_bounds = array<i64: 32, 1>}, {pipeline_mode = #tpu.pipeline_mode<synchronous>, transform_indices = @transform_3, window_bounds = array<i64: 32, 9>}, {pipeline_mode = #tpu.pipeline_mode<synchronous>, transform_indices = @transform_4, window_bounds = array<i64: 64, 32>}, {pipeline_mode = #tpu.pipeline_mode<synchronous>, transform_indices = @transform_5, window_bounds = array<i64: 64, 1>}, {pipeline_mode = #tpu.pipeline_mode<synchronous>, transform_indices = @transform_6, window_bounds = array<i64: 64, 32>}, {pipeline_mode = #tpu.pipeline_mode<synchronous>, transform_indices = @transform_7, window_bounds = array<i64: 9, 256>}, {transform_indices = @transform_8, window_bounds = array<i64: 64, 256>}]} {
    %c0 = arith.constant 0 : index
    %c0_0 = arith.constant 0 : index
    %0 = vector.load %arg1[%c0, %c0_0] : memref<32x256xf32, #tpu.memory_space<vmem>>, vector<32x256xf32>
    %1 = arith.truncf %0 : vector<32x256xf32> to vector<32x256xbf16>
    %c0_1 = arith.constant 0 : index
    %c0_2 = arith.constant 0 : index
    %2 = vector.load %arg2[%c0_1, %c0_2] : memref<32x32xbf16, #tpu.memory_space<vmem>>, vector<32x32xbf16>
    %cst = arith.constant dense<0.000000e+00> : vector<32x256xf32>
    %3 = tpu.matmul %2, %1, %cst {dimension_numbers = #tpu.dot_dimension_numbers<[1], [0], [0], [1], [0, 0, 1, 1], [], []>} : vector<32x32xbf16>, vector<32x256xbf16>, vector<32x256xf32> -> vector<32x256xf32>
    %c0_3 = arith.constant 0 : index
    %c0_4 = arith.constant 0 : index
    %4 = vector.load %arg3[%c0_3, %c0_4] : memref<32x1xf32, #tpu.memory_space<vmem>>, vector<32x1xf32>
    %5 = vector.broadcast %4 : vector<32x1xf32> to vector<32x256xf32>
    %6 = arith.addf %3, %5 : vector<32x256xf32>
    %cst_5 = arith.constant 0.000000e+00 : f32
    %7 = vector.broadcast %cst_5 : f32 to vector<32x256xf32>
    %8 = arith.maximumf %6, %7 : vector<32x256xf32>
    %cst_6 = arith.constant 0.000000e+00 : f32
    %9 = vector.broadcast %cst_6 : f32 to vector<32x256xf32>
    %c0_7 = arith.constant 0 : index
    %c0_8 = arith.constant 0 : index
    %10 = vector.load %arg4[%c0_7, %c0_8] : memref<32x9xf32, #tpu.memory_space<vmem>>, vector<32x1xf32>
    %c17_i32 = arith.constant 17 : i32
    %11 = tpu.dynamic_rotate %8 by %c17_i32 dim 1 : vector<32x256xf32>, i32 -> vector<32x256xf32>
    %12 = vector.broadcast %10 : vector<32x1xf32> to vector<32x256xf32>
    %13 = arith.mulf %11, %12 : vector<32x256xf32>
    %c0_9 = arith.constant 0 : index
    %c0_10 = arith.constant 0 : index
    %14 = vector.load %arg8[%c0_9, %c0_10] : memref<9x256xf32, #tpu.memory_space<vmem>>, vector<1x256xf32>
    %15 = vector.broadcast %14 : vector<1x256xf32> to vector<32x256xf32>
    %16 = arith.mulf %13, %15 : vector<32x256xf32>
    %17 = arith.addf %9, %16 : vector<32x256xf32>
    %c0_11 = arith.constant 0 : index
    %c1 = arith.constant 1 : index
    %18 = vector.load %arg4[%c0_11, %c1] : memref<32x9xf32, #tpu.memory_space<vmem>>, vector<32x1xf32>
    %c16_i32 = arith.constant 16 : i32
    %19 = tpu.dynamic_rotate %8 by %c16_i32 dim 1 : vector<32x256xf32>, i32 -> vector<32x256xf32>
    %20 = vector.broadcast %18 : vector<32x1xf32> to vector<32x256xf32>
    %21 = arith.mulf %19, %20 : vector<32x256xf32>
    %c1_12 = arith.constant 1 : index
    %c0_13 = arith.constant 0 : index
    %22 = vector.load %arg8[%c1_12, %c0_13] : memref<9x256xf32, #tpu.memory_space<vmem>>, vector<1x256xf32>
    %23 = vector.broadcast %22 : vector<1x256xf32> to vector<32x256xf32>
    %24 = arith.mulf %21, %23 : vector<32x256xf32>
    %25 = arith.addf %17, %24 : vector<32x256xf32>
    %c0_14 = arith.constant 0 : index
    %c2 = arith.constant 2 : index
    %26 = vector.load %arg4[%c0_14, %c2] : memref<32x9xf32, #tpu.memory_space<vmem>>, vector<32x1xf32>
    %c15_i32 = arith.constant 15 : i32
    %27 = tpu.dynamic_rotate %8 by %c15_i32 dim 1 : vector<32x256xf32>, i32 -> vector<32x256xf32>
    %28 = vector.broadcast %26 : vector<32x1xf32> to vector<32x256xf32>
    %29 = arith.mulf %27, %28 : vector<32x256xf32>
    %c2_15 = arith.constant 2 : index
    %c0_16 = arith.constant 0 : index
    %30 = vector.load %arg8[%c2_15, %c0_16] : memref<9x256xf32, #tpu.memory_space<vmem>>, vector<1x256xf32>
    %31 = vector.broadcast %30 : vector<1x256xf32> to vector<32x256xf32>
    %32 = arith.mulf %29, %31 : vector<32x256xf32>
    %33 = arith.addf %25, %32 : vector<32x256xf32>
    %c0_17 = arith.constant 0 : index
    %c3 = arith.constant 3 : index
    %34 = vector.load %arg4[%c0_17, %c3] : memref<32x9xf32, #tpu.memory_space<vmem>>, vector<32x1xf32>
    %c1_i32 = arith.constant 1 : i32
    %35 = tpu.dynamic_rotate %8 by %c1_i32 dim 1 : vector<32x256xf32>, i32 -> vector<32x256xf32>
    %36 = vector.broadcast %34 : vector<32x1xf32> to vector<32x256xf32>
    %37 = arith.mulf %35, %36 : vector<32x256xf32>
    %c3_18 = arith.constant 3 : index
    %c0_19 = arith.constant 0 : index
    %38 = vector.load %arg8[%c3_18, %c0_19] : memref<9x256xf32, #tpu.memory_space<vmem>>, vector<1x256xf32>
    %39 = vector.broadcast %38 : vector<1x256xf32> to vector<32x256xf32>
    %40 = arith.mulf %37, %39 : vector<32x256xf32>
    %41 = arith.addf %33, %40 : vector<32x256xf32>
    %c0_20 = arith.constant 0 : index
    %c4 = arith.constant 4 : index
    %42 = vector.load %arg4[%c0_20, %c4] : memref<32x9xf32, #tpu.memory_space<vmem>>, vector<32x1xf32>
    %43 = vector.broadcast %42 : vector<32x1xf32> to vector<32x256xf32>
    %44 = arith.mulf %8, %43 : vector<32x256xf32>
    %45 = arith.addf %41, %44 : vector<32x256xf32>
    %c0_21 = arith.constant 0 : index
    %c5 = arith.constant 5 : index
    %46 = vector.load %arg4[%c0_21, %c5] : memref<32x9xf32, #tpu.memory_space<vmem>>, vector<32x1xf32>
    %c255_i32 = arith.constant 255 : i32
    %47 = tpu.dynamic_rotate %8 by %c255_i32 dim 1 : vector<32x256xf32>, i32 -> vector<32x256xf32>
    %48 = vector.broadcast %46 : vector<32x1xf32> to vector<32x256xf32>
    %49 = arith.mulf %47, %48 : vector<32x256xf32>
    %c5_22 = arith.constant 5 : index
    %c0_23 = arith.constant 0 : index
    %50 = vector.load %arg8[%c5_22, %c0_23] : memref<9x256xf32, #tpu.memory_space<vmem>>, vector<1x256xf32>
    %51 = vector.broadcast %50 : vector<1x256xf32> to vector<32x256xf32>
    %52 = arith.mulf %49, %51 : vector<32x256xf32>
    %53 = arith.addf %45, %52 : vector<32x256xf32>
    %c0_24 = arith.constant 0 : index
    %c6 = arith.constant 6 : index
    %54 = vector.load %arg4[%c0_24, %c6] : memref<32x9xf32, #tpu.memory_space<vmem>>, vector<32x1xf32>
    %c241_i32 = arith.constant 241 : i32
    %55 = tpu.dynamic_rotate %8 by %c241_i32 dim 1 : vector<32x256xf32>, i32 -> vector<32x256xf32>
    %56 = vector.broadcast %54 : vector<32x1xf32> to vector<32x256xf32>
    %57 = arith.mulf %55, %56 : vector<32x256xf32>
    %c6_25 = arith.constant 6 : index
    %c0_26 = arith.constant 0 : index
    %58 = vector.load %arg8[%c6_25, %c0_26] : memref<9x256xf32, #tpu.memory_space<vmem>>, vector<1x256xf32>
    %59 = vector.broadcast %58 : vector<1x256xf32> to vector<32x256xf32>
    %60 = arith.mulf %57, %59 : vector<32x256xf32>
    %61 = arith.addf %53, %60 : vector<32x256xf32>
    %c0_27 = arith.constant 0 : index
    %c7 = arith.constant 7 : index
    %62 = vector.load %arg4[%c0_27, %c7] : memref<32x9xf32, #tpu.memory_space<vmem>>, vector<32x1xf32>
    %c240_i32 = arith.constant 240 : i32
    %63 = tpu.dynamic_rotate %8 by %c240_i32 dim 1 : vector<32x256xf32>, i32 -> vector<32x256xf32>
    %64 = vector.broadcast %62 : vector<32x1xf32> to vector<32x256xf32>
    %65 = arith.mulf %63, %64 : vector<32x256xf32>
    %c7_28 = arith.constant 7 : index
    %c0_29 = arith.constant 0 : index
    %66 = vector.load %arg8[%c7_28, %c0_29] : memref<9x256xf32, #tpu.memory_space<vmem>>, vector<1x256xf32>
    %67 = vector.broadcast %66 : vector<1x256xf32> to vector<32x256xf32>
    %68 = arith.mulf %65, %67 : vector<32x256xf32>
    %69 = arith.addf %61, %68 : vector<32x256xf32>
    %c0_30 = arith.constant 0 : index
    %c8 = arith.constant 8 : index
    %70 = vector.load %arg4[%c0_30, %c8] : memref<32x9xf32, #tpu.memory_space<vmem>>, vector<32x1xf32>
    %c239_i32 = arith.constant 239 : i32
    %71 = tpu.dynamic_rotate %8 by %c239_i32 dim 1 : vector<32x256xf32>, i32 -> vector<32x256xf32>
    %72 = vector.broadcast %70 : vector<32x1xf32> to vector<32x256xf32>
    %73 = arith.mulf %71, %72 : vector<32x256xf32>
    %c8_31 = arith.constant 8 : index
    %c0_32 = arith.constant 0 : index
    %74 = vector.load %arg8[%c8_31, %c0_32] : memref<9x256xf32, #tpu.memory_space<vmem>>, vector<1x256xf32>
    %75 = vector.broadcast %74 : vector<1x256xf32> to vector<32x256xf32>
    %76 = arith.mulf %73, %75 : vector<32x256xf32>
    %77 = arith.addf %69, %76 : vector<32x256xf32>
    %c0_33 = arith.constant 0 : index
    %c0_34 = arith.constant 0 : index
    %78 = vector.load %arg5[%c0_33, %c0_34] : memref<64x32xbf16, #tpu.memory_space<vmem>>, vector<64x32xbf16>
    %79 = arith.truncf %77 : vector<32x256xf32> to vector<32x256xbf16>
    %cst_35 = arith.constant dense<0.000000e+00> : vector<64x256xf32>
    %80 = tpu.matmul %78, %79, %cst_35 {dimension_numbers = #tpu.dot_dimension_numbers<[1], [0], [0], [1], [0, 0, 1, 1], [], []>} : vector<64x32xbf16>, vector<32x256xbf16>, vector<64x256xf32> -> vector<64x256xf32>
    %c0_36 = arith.constant 0 : index
    %c0_37 = arith.constant 0 : index
    %81 = vector.load %arg6[%c0_36, %c0_37] : memref<64x1xf32, #tpu.memory_space<vmem>>, vector<64x1xf32>
    %82 = vector.broadcast %81 : vector<64x1xf32> to vector<64x256xf32>
    %83 = arith.addf %80, %82 : vector<64x256xf32>
    %cst_38 = arith.constant 0.000000e+00 : f32
    %84 = vector.broadcast %cst_38 : f32 to vector<64x256xf32>
    %85 = arith.maximumf %83, %84 : vector<64x256xf32>
    %c0_39 = arith.constant 0 : index
    %c0_40 = arith.constant 0 : index
    %86 = vector.load %arg7[%c0_39, %c0_40] : memref<64x32xf32, #tpu.memory_space<vmem>>, vector<64x32xf32>
    %cst_41 = arith.constant dense<0.000000e+00> : vector<64x256xf32>
    %87 = tpu.matmul %86, %0, %cst_41 {dimension_numbers = #tpu.dot_dimension_numbers<[1], [0], [0], [1], [0, 0, 1, 1], [], []>} : vector<64x32xf32>, vector<32x256xf32>, vector<64x256xf32> -> vector<64x256xf32>
    %88 = arith.addf %85, %87 : vector<64x256xf32>
    %c0_42 = arith.constant 0 : index
    %c0_43 = arith.constant 0 : index
    %89 = vector.load %arg9[%c0_42, %c0_43] : memref<64x256xf32, #tpu.memory_space<vmem>>, vector<64x256xf32>
    tpu.vector_store %arg9[%c0_42, %c0_43], %88 {strides = array<i32>} : memref<64x256xf32, #tpu.memory_space<vmem>>, vector<64x256xf32>,
    return
  }
  func.func @transform_0(%arg0: i32) -> (i32, i32) {
    %c0_i32 = arith.constant 0 : i32
    %c0_i32_0 = arith.constant 0 : i32
    return %arg0, %c0_i32 : i32, i32
  }
  func.func @transform_1(%arg0: i32) -> (i32, i32) {
    %c0_i32 = arith.constant 0 : i32
    %c0_i32_0 = arith.constant 0 : i32
    %c0_i32_1 = arith.constant 0 : i32
    return %c0_i32, %c0_i32_0 : i32, i32
  }
  func.func @transform_2(%arg0: i32) -> (i32, i32) {
    %c0_i32 = arith.constant 0 : i32
    %c0_i32_0 = arith.constant 0 : i32
    %c0_i32_1 = arith.constant 0 : i32
    return %c0_i32, %c0_i32_0 : i32, i32
  }
  func.func @transform_3(%arg0: i32) -> (i32, i32) {
    %c0_i32 = arith.constant 0 : i32
    %c0_i32_0 = arith.constant 0 : i32
    %c0_i32_1 = arith.constant 0 : i32
    return %c0_i32, %c0_i32_0 : i32, i32
  }
  func.func @transform_4(%arg0: i32) -> (i32, i32) {
    %c0_i32 = arith.constant 0 : i32
    %c0_i32_0 = arith.constant 0 : i32
    %c0_i32_1 = arith.constant 0 : i32
    return %c0_i32, %c0_i32_0 : i32, i32
  }
  func.func @transform_5(%arg0: i32) -> (i32, i32) {
    %c0_i32 = arith.constant 0 : i32
    %c0_i32_0 = arith.constant 0 : i32
    %c0_i32_1 = arith.constant 0 : i32
    return %c0_i32, %c0_i32_0 : i32, i32
  }
  func.func @transform_6(%arg0: i32) -> (i32, i32) {
    %c0_i32 = arith.constant 0 : i32
    %c0_i32_0 = arith.constant 0 : i32
    %c0_i32_1 = arith.constant 0 : i32
    return %c0_i32, %c0_i32_0 : i32, i32
  }
  func.func @transform_7(%arg0: i32) -> (i32, i32) {
    %c0_i32 = arith.constant 0 : i32
    %c0_i32_0 = arith.constant 0 : i32
    %c0_i32_1 = arith.constant 0 : i32
    return %c0_i32, %c0_i32_0 : i32, i32
  }
  func.func @transform_8(%arg0: i32) -> (i32, i32) {
    %c0_i32 = arith.constant 0 : i32
    %c0_i32_0 = arith.constant 0 : i32
    return %arg0, %c0_i32 : i32, i32
  }
}

</mosaic_0001>

<llo_original>
// kernel: shufflenet_forward.1
$region0: #{shufflenet_forward.1}
  #allocation0 [shape = 'u32[]', space=smem, size = 0x4, offset = 0x4, fixed_abs, tag = 'smem constant byte address 0x4 - core index']
  #allocation1 [shape = 'u32[72,128]{1,0:T(1,128)}', space=vmem, size = 0x9000, scoped, tag = 'internal scratch']
  %s0 = inlined_call_operand.vmem [shape: f32[64,256], index: 0, kind: input, shape index: {}]
  %s1 = inlined_call_operand.vmem [shape: bf16[32,32], index: 1, kind: input, shape index: {}]
  %s2 = inlined_call_operand.vmem [shape: f32[32,1], index: 2, kind: input, shape index: {}]
  %s3 = inlined_call_operand.vmem [shape: f32[32,9], index: 3, kind: input, shape index: {}]
  %s4 = inlined_call_operand.vmem [shape: bf16[64,32], index: 4, kind: input, shape index: {}]
  %s5 = inlined_call_operand.vmem [shape: f32[64,1], index: 5, kind: input, shape index: {}]
  %s6 = inlined_call_operand.vmem [shape: f32[64,32], index: 6, kind: input, shape index: {}]
  %s7 = inlined_call_operand.vmem [shape: f32[9,256], index: 7, kind: input, shape index: {}]
  %s8 = inlined_call_operand.vmem [shape: f32[128,256], index: 8, kind: output, shape index: {}]
  %s9 = sld [smem:[#allocation0]]
  $region65: #{shufflenet_forward.1} parent=0
    _
  %s11 = ssub.s32 1, %s9
  %s12 = scalar_select 0, %s11, %s9
  loop: start=0, step=1, limit=4
  $region2: #{shufflenet_forward.1} parent=0 // loop_pre_header
    _
  $region3: #{shufflenet_forward.1} parent=0 // loop_header
    %s14 = sphi 0, %s18
    %p15 = scmp.ge.s32.totalorder %s14, 4
    %s24 = sphi 0, %s26
    %s27 = sphi 0, %s24
    %s28 = sphi 0, %s27
    %s44 = sphi 0, %s28
    %s48 = sphi 0, %s48
    %s50 = sphi 0, %s48
    %s51 = sphi 0, %s50
    %s65 = sphi 0, %s51
    %s69 = sphi 0, %s69
    %s71 = sphi 0, %s69
    %s72 = sphi 0, %s71
    %s86 = sphi 0, %s72
    %s90 = sphi 0, %s90
    %s92 = sphi 0, %s90
    %s93 = sphi 0, %s92
    %s107 = sphi 0, %s93
    %s111 = sphi 0, %s111
    %s113 = sphi 0, %s111
    %s114 = sphi 0, %s113
    %s128 = sphi 0, %s114
    %s132 = sphi 0, %s132
    %s134 = sphi 0, %s132
    %s135 = sphi 0, %s134
    %s149 = sphi 0, %s135
    %s153 = sphi 0, %s153
    %s155 = sphi 0, %s153
    %s156 = sphi 0, %s155
    %s170 = sphi 0, %s156
    %s174 = sphi 0, %s174
    %s176 = sphi 0, %s174
    %s177 = sphi 0, %s176
    %s191 = sphi 0, %s177
    %s197 = sphi 0, %s199
    %s200 = sphi 0, %s197
    %s201 = sphi 0, %s200
    %s217 = sphi 0, %s201
  $region4: #{shufflenet_forward.1} parent=0 // loop_header_branch
    %17 = sbr.rel (%p15) target = $region8
  $region5: #{shufflenet_forward.1} parent=0 // loop_body
    %s19 = ssub.s32 %s14, 1
    %s20 = ssub.s32 %s14, 2
    %s21 = sadd.s32 %s14, 1
    %s22 = ssub.s32 %s14, %s21
    %p23 = scmp.eq.s32.totalorder %s22, 0
    %s25 = sadd.s32 %s24, 1
    %s26 = scalar_select %p23, %s24, %s25
    %p29 = pneg %p23
    %p30 = scmp.eq.s32.totalorder %s14, 1
    %p31 = por %p29, %p30
    %p32 = scmp.ne.s32.totalorder %s24, %s27
    %p33 = scmp.eq.s32.totalorder %s14, 0
    %p34 = por %p32, %p33
    %p35 = scmp.ne.s32.totalorder %s24, %s27
    %p36 = scmp.eq.s32.totalorder %s19, 1
    %p37 = por %p35, %p36
    %p38 = scmp.ne.s32.totalorder %s27, %s28
    %p39 = scmp.eq.s32.totalorder %s19, 0
    %p40 = por %p38, %p39
    %p41 = scmp.ne.s32.totalorder %s27, %s28
    %p42 = scmp.eq.s32.totalorder %s20, 1
    %p43 = por %p41, %p42
    %p45 = scmp.ne.s32.totalorder %s28, %s44
    %p46 = scmp.eq.s32.totalorder %s20, 0
    %p47 = por %p45, %p46
    %s49 = sadd.s32 %s48, 1
    %p52 = scmp.eq.s32.totalorder %s14, 1
    %p53 = scmp.ne.s32.totalorder %s48, %s50
    %p54 = scmp.eq.s32.totalorder %s14, 0
    %p55 = por %p53, %p54
    %p56 = scmp.ne.s32.totalorder %s48, %s50
    %p57 = scmp.eq.s32.totalorder %s19, 1
    %p58 = por %p56, %p57
    %p59 = scmp.ne.s32.totalorder %s50, %s51
    %p60 = scmp.eq.s32.totalorder %s19, 0
    %p61 = por %p59, %p60
    %p62 = scmp.ne.s32.totalorder %s50, %s51
    %p63 = scmp.eq.s32.totalorder %s20, 1
    %p64 = por %p62, %p63
    %p66 = scmp.ne.s32.totalorder %s51, %s65
    %p67 = scmp.eq.s32.totalorder %s20, 0
    %p68 = por %p66, %p67
    %s70 = sadd.s32 %s69, 1
    %p73 = scmp.eq.s32.totalorder %s14, 1
    %p74 = scmp.ne.s32.totalorder %s69, %s71
    %p75 = scmp.eq.s32.totalorder %s14, 0
    %p76 = por %p74, %p75
    %p77 = scmp.ne.s32.totalorder %s69, %s71
    %p78 = scmp.eq.s32.totalorder %s19, 1
    %p79 = por %p77, %p78
    %p80 = scmp.ne.s32.totalorder %s71, %s72
    %p81 = scmp.eq.s32.totalorder %s19, 0
    %p82 = por %p80, %p81
    %p83 = scmp.ne.s32.totalorder %s71, %s72
    %p84 = scmp.eq.s32.totalorder %s20, 1
    %p85 = por %p83, %p84
    %p87 = scmp.ne.s32.totalorder %s72, %s86
    %p88 = scmp.eq.s32.totalorder %s20, 0
    %p89 = por %p87, %p88
    %s91 = sadd.s32 %s90, 1
    %p94 = scmp.eq.s32.totalorder %s14, 1
    %p95 = scmp.ne.s32.totalorder %s90, %s92
    %p96 = scmp.eq.s32.totalorder %s14, 0
    %p97 = por %p95, %p96
    %p98 = scmp.ne.s32.totalorder %s90, %s92
    %p99 = scmp.eq.s32.totalorder %s19, 1
    %p100 = por %p98, %p99
    %p101 = scmp.ne.s32.totalorder %s92, %s93
    %p102 = scmp.eq.s32.totalorder %s19, 0
    %p103 = por %p101, %p102
    %p104 = scmp.ne.s32.totalorder %s92, %s93
    %p105 = scmp.eq.s32.totalorder %s20, 1
    %p106 = por %p104, %p105
    %p108 = scmp.ne.s32.totalorder %s93, %s107
    %p109 = scmp.eq.s32.totalorder %s20, 0
    %p110 = por %p108, %p109
    %s112 = sadd.s32 %s111, 1
    %p115 = scmp.eq.s32.totalorder %s14, 1
    %p116 = scmp.ne.s32.totalorder %s111, %s113
    %p117 = scmp.eq.s32.totalorder %s14, 0
    %p118 = por %p116, %p117
    %p119 = scmp.ne.s32.totalorder %s111, %s113
    %p120 = scmp.eq.s32.totalorder %s19, 1
    %p121 = por %p119, %p120
    %p122 = scmp.ne.s32.totalorder %s113, %s114
    %p123 = scmp.eq.s32.totalorder %s19, 0
    %p124 = por %p122, %p123
    %p125 = scmp.ne.s32.totalorder %s113, %s114
    %p126 = scmp.eq.s32.totalorder %s20, 1
    %p127 = por %p125, %p126
    %p129 = scmp.ne.s32.totalorder %s114, %s128
    %p130 = scmp.eq.s32.totalorder %s20, 0
    %p131 = por %p129, %p130
    %s133 = sadd.s32 %s132, 1
    %p136 = scmp.eq.s32.totalorder %s14, 1
    %p137 = scmp.ne.s32.totalorder %s132, %s134
    %p138 = scmp.eq.s32.totalorder %s14, 0
    %p139 = por %p137, %p138
    %p140 = scmp.ne.s32.totalorder %s132, %s134
    %p141 = scmp.eq.s32.totalorder %s19, 1
    %p142 = por %p140, %p141
    %p143 = scmp.ne.s32.totalorder %s134, %s135
    %p144 = scmp.eq.s32.totalorder %s19, 0
    %p145 = por %p143, %p144
    %p146 = scmp.ne.s32.totalorder %s134, %s135
    %p147 = scmp.eq.s32.totalorder %s20, 1
    %p148 = por %p146, %p147
    %p150 = scmp.ne.s32.totalorder %s135, %s149
    %p151 = scmp.eq.s32.totalorder %s20, 0
    %p152 = por %p150, %p151
    %s154 = sadd.s32 %s153, 1
    %p157 = scmp.eq.s32.totalorder %s14, 1
    %p158 = scmp.ne.s32.totalorder %s153, %s155
    %p159 = scmp.eq.s32.totalorder %s14, 0
    %p160 = por %p158, %p159
    %p161 = scmp.ne.s32.totalorder %s153, %s155
    %p162 = scmp.eq.s32.totalorder %s19, 1
    %p163 = por %p161, %p162
    %p164 = scmp.ne.s32.totalorder %s155, %s156
    %p165 = scmp.eq.s32.totalorder %s19, 0
    %p166 = por %p164, %p165
    %p167 = scmp.ne.s32.totalorder %s155, %s156
    %p168 = scmp.eq.s32.totalorder %s20, 1
    %p169 = por %p167, %p168
    %p171 = scmp.ne.s32.totalorder %s156, %s170
    %p172 = scmp.eq.s32.totalorder %s20, 0
    %p173 = por %p171, %p172
    %s175 = sadd.s32 %s174, 1
    %p178 = scmp.eq.s32.totalorder %s14, 1
    %p179 = scmp.ne.s32.totalorder %s174, %s176
    %p180 = scmp.eq.s32.totalorder %s14, 0
    %p181 = por %p179, %p180
    %p182 = scmp.ne.s32.totalorder %s174, %s176
    %p183 = scmp.eq.s32.totalorder %s19, 1
    %p184 = por %p182, %p183
    %p185 = scmp.ne.s32.totalorder %s176, %s177
    %p186 = scmp.eq.s32.totalorder %s19, 0
    %p187 = por %p185, %p186
    %p188 = scmp.ne.s32.totalorder %s176, %s177
    %p189 = scmp.eq.s32.totalorder %s20, 1
    %p190 = por %p188, %p189
    %p192 = scmp.ne.s32.totalorder %s177, %s191
    %p193 = scmp.eq.s32.totalorder %s20, 0
    %p194 = por %p192, %p193
    %s195 = ssub.s32 %s14, %s21
    %p196 = scmp.eq.s32.totalorder %s195, 0
    %s198 = sadd.s32 %s197, 1
    %s199 = scalar_select %p196, %s197, %s198
    %p202 = pneg %p196
    %p203 = scmp.eq.s32.totalorder %s14, 1
    %p204 = por %p202, %p203
    %p205 = scmp.ne.s32.totalorder %s197, %s200
    %p206 = scmp.eq.s32.totalorder %s14, 0
    %p207 = por %p205, %p206
    %p208 = scmp.ne.s32.totalorder %s197, %s200
    %p209 = scmp.eq.s32.totalorder %s19, 1
    %p210 = por %p208, %p209
    %p211 = scmp.ne.s32.totalorder %s200, %s201
    %p212 = scmp.eq.s32.totalorder %s19, 0
    %p213 = por %p211, %p212
    %p214 = scmp.ne.s32.totalorder %s200, %s201
    %p215 = scmp.eq.s32.totalorder %s20, 1
    %p216 = por %p214, %p215
    %p218 = scmp.ne.s32.totalorder %s201, %s217
    %p219 = scmp.eq.s32.totalorder %s20, 0
    %p220 = por %p218, %p219
    %p221 = scmp.le.s32.totalorder 1, %s14
    %p222 = scmp.lt.s32.totalorder %s14, 3
    %p223 = pnand %p221, %p222
    %p224 = pneg %p223
    // Predicated region
    $region9: #{shufflenet_forward.1} parent=5 // pred_check
      _
    $region10: #{shufflenet_forward.1} parent=5 // pred_check_branch
      %226 = sbr.rel (%p223) target = $region12
    $region11: #{shufflenet_forward.1} parent=5 // pred_region
      %s227 = ssub.s32 %s14, 1
      // Predicated region
      $region13: #{shufflenet_forward.1} parent=11 // pred_check
        %p228 = pneg %p61
      $region14: #{shufflenet_forward.1} parent=11 // pred_check_branch
        %230 = sbr.rel (%p228) target = $region16
      $region15: #{shufflenet_forward.1} parent=11 // pred_region
        _
      $region16: #{shufflenet_forward.1} parent=11 // pred_fallthru
        _
      // Predicated region
      $region17: #{shufflenet_forward.1} parent=11 // pred_check
        %p231 = pneg %p82
      $region18: #{shufflenet_forward.1} parent=11 // pred_check_branch
        %233 = sbr.rel (%p231) target = $region20
      $region19: #{shufflenet_forward.1} parent=11 // pred_region
        _
      $region20: #{shufflenet_forward.1} parent=11 // pred_fallthru
        _
      // Predicated region
      $region21: #{shufflenet_forward.1} parent=11 // pred_check
        %p234 = pneg %p103
      $region22: #{shufflenet_forward.1} parent=11 // pred_check_branch
        %236 = sbr.rel (%p234) target = $region24
      $region23: #{shufflenet_forward.1} parent=11 // pred_region
        _
      $region24: #{shufflenet_forward.1} parent=11 // pred_fallthru
        _
      // Predicated region
      $region25: #{shufflenet_forward.1} parent=11 // pred_check
        %p237 = pneg %p124
      $region26: #{shufflenet_forward.1} parent=11 // pred_check_branch
        %239 = sbr.rel (%p237) target = $region28
      $region27: #{shufflenet_forward.1} parent=11 // pred_region
        _
      $region28: #{shufflenet_forward.1} parent=11 // pred_fallthru
        _
      // Predicated region
      $region29: #{shufflenet_forward.1} parent=11 // pred_check
        %p240 = pneg %p145
      $region30: #{shufflenet_forward.1} parent=11 // pred_check_branch
        %242 = sbr.rel (%p240) target = $region32
      $region31: #{shufflenet_forward.1} parent=11 // pred_region
        _
      $region32: #{shufflenet_forward.1} parent=11 // pred_fallthru
        _
      // Predicated region
      $region33: #{shufflenet_forward.1} parent=11 // pred_check
        %p243 = pneg %p166
      $region34: #{shufflenet_forward.1} parent=11 // pred_check_branch
        %245 = sbr.rel (%p243) target = $region36
      $region35: #{shufflenet_forward.1} parent=11 // pred_region
        _
      $region36: #{shufflenet_forward.1} parent=11 // pred_fallthru
        _
      // Predicated region
      $region37: #{shufflenet_forward.1} parent=11 // pred_check
        %p246 = pneg %p187
      $region38: #{shufflenet_forward.1} parent=11 // pred_check_branch
        %248 = sbr.rel (%p246) target = $region40
      $region39: #{shufflenet_forward.1} parent=11 // pred_region
        _
      $region40: #{shufflenet_forward.1} parent=11 // pred_fallthru
        _
    $region12: #{shufflenet_forward.1} parent=5 // pred_fallthru
      _
    %p249 = scmp.lt.s32.totalorder %s14, 2
    // Predicated region
    $region41: #{shufflenet_forward.1} parent=5 // pred_check
      %p250 = pneg %p249
    $region42: #{shufflenet_forward.1} parent=5 // pred_check_branch
      %252 = sbr.rel (%p250) target = $region44
    $region43: #{shufflenet_forward.1} parent=5 // pred_region
      // Predicated region
      $region45: #{shufflenet_forward.1} parent=43 // pred_check
        %p253 = pneg %p34
      $region46: #{shufflenet_forward.1} parent=43 // pred_check_branch
        %255 = sbr.rel (%p253) target = $region48
      $region47: #{shufflenet_forward.1} parent=43 // pred_region
        %s256 = smul.u32 4, %s14
        %p257 = scmp.lt.s32.totalorder %s256, 7
        %s258 = scalar_select %p257, %s256, 7
        %s259 = smul.addr %s258, 2
        %s260 = smul.addr %s259, 8
        %s261 = scalar_lea.vmem %s0, %s260
        %s262 = smul.u32 4, %s14
      $region48: #{shufflenet_forward.1} parent=43 // pred_fallthru
        _
    $region44: #{shufflenet_forward.1} parent=5 // pred_fallthru
      _
    %p263 = scmp.le.s32.totalorder 1, %s14
    %p264 = scmp.lt.s32.totalorder %s14, 3
    %p265 = pnand %p263, %p264
    %p266 = pneg %p265
    // Predicated region
    $region49: #{shufflenet_forward.1} parent=5 // pred_check
      _
    $region50: #{shufflenet_forward.1} parent=5 // pred_check_branch
      %268 = sbr.rel (%p265) target = $region52
    $region51: #{shufflenet_forward.1} parent=5 // pred_region
      %s269 = ssub.s32 %s14, 1
      %s270 = smul.u32 4, %s19
      %p271 = scmp.lt.s32.totalorder %s270, 7
      %s272 = scalar_select %p271, %s270, 7
      %s273 = smul.addr %s272, 2
      %s274 = smul.addr %s273, 8
      %s275 = scalar_lea.vmem %s0, %s274
      %p276 = pneg %p40
      %p277 = pneg %p37
      %p278 = pneg %p61
      %p279 = pneg %p58
      %p280 = pneg %p82
      %p281 = pneg %p79
      %p282 = pneg %p103
      %p283 = pneg %p100
      %p284 = pneg %p124
      %p285 = pneg %p121
      %p286 = pneg %p145
      %p287 = pneg %p142
      %p288 = pneg %p166
      %p289 = pneg %p163
      %p290 = pneg %p187
      %p291 = pneg %p184
      %p292 = pneg %p213
      %p293 = pneg %p210
      %s294 = smul.u32 8, %s19
      %p295 = scmp.lt.s32.totalorder %s294, 15
      %s296 = scalar_select %p295, %s294, 15
      %s297 = smul.addr %s296, 2
      %s298 = smul.addr %s297, 8
      %s299 = scalar_lea.vmem %s8, %s298
      %s300 = smul.u32 4, %s19
      %p301 = scmp.lt.s32.totalorder %s300, 7
      %s302 = scalar_select %p301, %s300, 7
      %s303 = smul.addr %s302, 2
      %s304 = smul.addr %s303, 8
      %s305 = scalar_lea.vmem %s0, %s304
      %s306 = smul.u32 4, %s19
      %s307 = smul.u32 8, %s19
      %p308 = scmp.lt.s32.totalorder %s307, 15
      %s309 = scalar_select %p308, %s307, 15
      %s310 = smul.addr %s309, 2
      %s311 = smul.addr %s310, 8
      %s312 = scalar_lea.vmem %s8, %s311
      %s313 = smul.u32 8, %s19
      %v315 = vld [vmem:[%s305] sm:$0xff]
      %v316 = vld [vmem:[%s305 + $0x8] sm:$0xff]
      %v317 = vld [vmem:[%s305 + $0x10] sm:$0xff]
      %v318 = vld [vmem:[%s305 + $0x18] sm:$0xff]
      %v319 = vld [vmem:[%s305 + $0x20] sm:$0xff]
      %v320 = vld [vmem:[%s305 + $0x28] sm:$0xff]
      %v321 = vld [vmem:[%s305 + $0x30] sm:$0xff]
      %v322 = vld [vmem:[%s305 + $0x38] sm:$0xff]
      %v323 = vpack.c.bf16 %v317, %v315
      %v324 = vpack.c.bf16 %v318, %v316
      %v325 = vpack.c.bf16 %v321, %v319
      %v326 = vpack.c.bf16 %v322, %v320
      %v327 = vld [vmem:[%s1] sm:$0xf]
      %v328 = vld [vmem:[%s1 + $0x4] sm:$0xf]
      %v329 = vld [vmem:[%s1 + $0x8] sm:$0xf]
      %v330 = vld [vmem:[%s1 + $0xc] sm:$0xf]
      %v331 = vld [vmem:[%s2] sm:$0xff]
      %v332 = vld [vmem:[%s2 + $0x8] sm:$0xff]
      %v333 = vld [vmem:[%s2 + $0x10] sm:$0xff]
      %v334 = vld [vmem:[%s2 + $0x18] sm:$0xff]
      %336 = vset.pattern.permute.xlu0 0
      %337 = vperm.xlu0 %336, %v331
      %v338 = vpop.permute.xlu0 %337
      %341 = vset.pattern.permute.xlu0 0
      %342 = vperm.xlu0 %341, %v332
      %v343 = vpop.permute.xlu0 %342
      %346 = vset.pattern.permute.xlu0 0
      %347 = vperm.xlu0 %346, %v333
      %v348 = vpop.permute.xlu0 %347
      %351 = vset.pattern.permute.xlu0 0
      %352 = vperm.xlu0 %351, %v334
      %v353 = vpop.permute.xlu0 %352
      %v359 = vunpack.c.l.b16 %v327
      %v360 = vunpack.c.l.b16 %v328
      %v361 = vunpack.c.l.b16 %v329
      %v362 = vunpack.c.l.b16 %v330
      %v363 = vpack.c.b16 %v360, %v359
      %v364 = vpack.c.b16 %v362, %v361
      %vm365 = vcmask 261120
      %v367 = vsel %vm365, %v363, 0
      %v370 = vsel %vm365, %v364, 0
      %372 = vmatpush.bf16.msra.mxu0 0
      %373 = vmatpush.bf16.msra.mxu0 0
      %374 = vmatpush.bf16.msra.mxu0 0
      %375 = vmatpush.bf16.msra.mxu0 0
      %376 = vmatpush.bf16.msra.mxu0 0
      %377 = vmatpush.bf16.msra.mxu0 0
      %378 = vmatpush.bf16.msra.mxu0 %v325
      %379 = vmatpush.bf16.msra.mxu0 %v323
      %380 = vmatmul.bf16.gmra.mxu0 %v367
      %v381 = vpop.f32.mrf.mxu0
      %v382 = vadd.f32 %v338, %v381
      %v383 = vpop.f32.mrf.mxu0
      %v384 = vadd.f32 %v343, %v383
      %385 = vmatmul.bf16.gmra.mxu0 %v370
      %v386 = vpop.f32.mrf.mxu0
      %v387 = vadd.f32 %v348, %v386
      %v388 = vpop.f32.mrf.mxu0
      %v389 = vadd.f32 %v353, %v388
      %390 = vdwg.mxu0
      %391 = vmatpush.bf16.msra.mxu0 0
      %392 = vmatpush.bf16.msra.mxu0 0
      %393 = vmatpush.bf16.msra.mxu0 0
      %394 = vmatpush.bf16.msra.mxu0 0
      %395 = vmatpush.bf16.msra.mxu0 0
      %396 = vmatpush.bf16.msra.mxu0 0
      %397 = vmatpush.bf16.msra.mxu0 %v326
      %398 = vmatpush.bf16.msra.mxu0 %v324
      %399 = vmatmul.bf16.gmra.mxu0 %v367
      %v400 = vpop.f32.mrf.mxu0
      %v401 = vadd.f32 %v338, %v400
      %v402 = vpop.f32.mrf.mxu0
      %v403 = vadd.f32 %v343, %v402
      %404 = vmatmul.bf16.gmra.mxu0 %v370
      %v405 = vpop.f32.mrf.mxu0
      %v406 = vadd.f32 %v348, %v405
      %v407 = vpop.f32.mrf.mxu0
      %v408 = vadd.f32 %v353, %v407
      %409 = vdwg.mxu0
      %v410 = vmax.f32 %v382, 0.0
      %v411 = vmax.f32 %v401, 0.0
      %v412 = vmax.f32 %v384, 0.0
      %v413 = vmax.f32 %v403, 0.0
      %v414 = vmax.f32 %v387, 0.0
      %v415 = vmax.f32 %v406, 0.0
      %v416 = vmax.f32 %v389, 0.0
      %v417 = vmax.f32 %v408, 0.0
      %v418 = vld [vmem:[%s3] sm:$0xff]
      %v419 = vld [vmem:[%s3 + $0x8] sm:$0xff]
      %v420 = vld [vmem:[%s3 + $0x10] sm:$0xff]
      %v421 = vld [vmem:[%s3 + $0x18] sm:$0xff]
      %422 = vrot.lane.b32.xlu0 %v410, 17
      %v423 = vpop.permute.xlu0 %422
      %424 = vrot.lane.b32.xlu0 %v412, 17
      %v425 = vpop.permute.xlu0 %424
      %426 = vrot.lane.b32.xlu0 %v414, 17
      %v427 = vpop.permute.xlu0 %426
      %428 = vrot.lane.b32.xlu0 %v416, 17
      %v429 = vpop.permute.xlu0 %428
      %430 = vrot.lane.b32.xlu0 %v411, 17
      %v431 = vpop.permute.xlu0 %430
      %432 = vrot.lane.b32.xlu0 %v413, 17
      %v433 = vpop.permute.xlu0 %432
      %434 = vrot.lane.b32.xlu0 %v415, 17
      %v435 = vpop.permute.xlu0 %434
      %436 = vrot.lane.b32.xlu0 %v417, 17
      %v437 = vpop.permute.xlu0 %436
      %v438 = vlaneseq
      %v439 = vand.u32 %v438, 127
      %vm440 = vcmp.lt.s32.totalorder %v439, 17
      %v441 = vsel %vm440, %v423, %v431
      %v442 = vsel %vm440, %v425, %v433
      %v443 = vsel %vm440, %v427, %v435
      %v444 = vsel %vm440, %v429, %v437
      %v445 = vsel %vm440, %v431, %v423
      %v446 = vsel %vm440, %v433, %v425
      %v447 = vsel %vm440, %v435, %v427
      %v448 = vsel %vm440, %v437, %v429
      %450 = vset.pattern.permute.xlu0 0
      %451 = vperm.xlu0 %450, %v418
      %v452 = vpop.permute.xlu0 %451
      %455 = vset.pattern.permute.xlu0 0
      %456 = vperm.xlu0 %455, %v419
      %v457 = vpop.permute.xlu0 %456
      %460 = vset.pattern.permute.xlu0 0
      %461 = vperm.xlu0 %460, %v420
      %v462 = vpop.permute.xlu0 %461
      %465 = vset.pattern.permute.xlu0 0
      %466 = vperm.xlu0 %465, %v421
      %v467 = vpop.permute.xlu0 %466
      %v469 = vmul.f32 %v445, %v452
      %v470 = vmul.f32 %v441, %v452
      %v471 = vmul.f32 %v446, %v457
      %v472 = vmul.f32 %v442, %v457
      %v473 = vmul.f32 %v447, %v462
      %v474 = vmul.f32 %v443, %v462
      %v475 = vmul.f32 %v448, %v467
      %v476 = vmul.f32 %v444, %v467
      %v477 = vld [vmem:[%s7] ss:$8 sm:$0x3]
      %v479 = vperm.slane %v477, 0
      %v480 = vperm.slane %v477, 1
      %v483 = vmul.f32 %v469, %v479
      %v484 = vmul.f32 %v470, %v480
      %v485 = vmul.f32 %v471, %v479
      %v486 = vmul.f32 %v472, %v480
      %v487 = vmul.f32 %v473, %v479
      %v488 = vmul.f32 %v474, %v480
      %v489 = vmul.f32 %v475, %v479
      %v490 = vmul.f32 %v476, %v480
      %v491 = vadd.f32 %v483, 0.0
      %v492 = vadd.f32 %v484, 0.0
      %v493 = vadd.f32 %v485, 0.0
      %v494 = vadd.f32 %v486, 0.0
      %v495 = vadd.f32 %v487, 0.0
      %v496 = vadd.f32 %v488, 0.0
      %v497 = vadd.f32 %v489, 0.0
      %v498 = vadd.f32 %v490, 0.0
      %499 = vrot.lane.b32.xlu0 %v410, 16
      %v500 = vpop.permute.xlu0 %499
      %501 = vrot.lane.b32.xlu0 %v412, 16
      %v502 = vpop.permute.xlu0 %501
      %503 = vrot.lane.b32.xlu0 %v414, 16
      %v504 = vpop.permute.xlu0 %503
      %505 = vrot.lane.b32.xlu0 %v416, 16
      %v506 = vpop.permute.xlu0 %505
      %507 = vrot.lane.b32.xlu0 %v411, 16
      %v508 = vpop.permute.xlu0 %507
      %509 = vrot.lane.b32.xlu0 %v413, 16
      %v510 = vpop.permute.xlu0 %509
      %511 = vrot.lane.b32.xlu0 %v415, 16
      %v512 = vpop.permute.xlu0 %511
      %513 = vrot.lane.b32.xlu0 %v417, 16
      %v514 = vpop.permute.xlu0 %513
      %vm515 = vcmp.lt.s32.totalorder %v439, 16
      %v516 = vsel %vm515, %v500, %v508
      %v517 = vsel %vm515, %v502, %v510
      %v518 = vsel %vm515, %v504, %v512
      %v519 = vsel %vm515, %v506, %v514
      %v520 = vsel %vm515, %v508, %v500
      %v521 = vsel %vm515, %v510, %v502
      %v522 = vsel %vm515, %v512, %v504
      %v523 = vsel %vm515, %v514, %v506
      %524 = vset.pattern.permute.xlu0 1
      %525 = vperm.xlu0 %524, %v418
      %v526 = vpop.permute.xlu0 %525
      %528 = vset.pattern.permute.xlu0 1
      %529 = vperm.xlu0 %528, %v419
      %v530 = vpop.permute.xlu0 %529
      %532 = vset.pattern.permute.xlu0 1
      %533 = vperm.xlu0 %532, %v420
      %v534 = vpop.permute.xlu0 %533
      %536 = vset.pattern.permute.xlu0 1
      %537 = vperm.xlu0 %536, %v421
      %v538 = vpop.permute.xlu0 %537
      %v540 = vmul.f32 %v520, %v526
      %v541 = vmul.f32 %v516, %v526
      %v542 = vmul.f32 %v521, %v530
      %v543 = vmul.f32 %v517, %v530
      %v544 = vmul.f32 %v522, %v534
      %v545 = vmul.f32 %v518, %v534
      %v546 = vmul.f32 %v523, %v538
      %v547 = vmul.f32 %v519, %v538
      %s548 = scalar_lea.vmem %s7, 1
      %v549 = vld [vmem:[%s548] ss:$8 sm:$0x3]
      %v551 = vperm.slane %v549, 0
      %v552 = vperm.slane %v549, 1
      %v555 = vmul.f32 %v540, %v551
      %v556 = vmul.f32 %v541, %v552
      %v557 = vmul.f32 %v542, %v551
      %v558 = vmul.f32 %v543, %v552
      %v559 = vmul.f32 %v544, %v551
      %v560 = vmul.f32 %v545, %v552
      %v561 = vmul.f32 %v546, %v551
      %v562 = vmul.f32 %v547, %v552
      %v563 = vadd.f32 %v491, %v555
      %v564 = vadd.f32 %v492, %v556
      %v565 = vadd.f32 %v493, %v557
      %v566 = vadd.f32 %v494, %v558
      %v567 = vadd.f32 %v495, %v559
      %v568 = vadd.f32 %v496, %v560
      %v569 = vadd.f32 %v497, %v561
      %v570 = vadd.f32 %v498, %v562
      %571 = vrot.lane.b32.xlu0 %v410, 15
      %v572 = vpop.permute.xlu0 %571
      %573 = vrot.lane.b32.xlu0 %v412, 15
      %v574 = vpop.permute.xlu0 %573
      %575 = vrot.lane.b32.xlu0 %v414, 15
      %v576 = vpop.permute.xlu0 %575
      %577 = vrot.lane.b32.xlu0 %v416, 15
      %v578 = vpop.permute.xlu0 %577
      %579 = vrot.lane.b32.xlu0 %v411, 15
      %v580 = vpop.permute.xlu0 %579
      %581 = vrot.lane.b32.xlu0 %v413, 15
      %v582 = vpop.permute.xlu0 %581
      %583 = vrot.lane.b32.xlu0 %v415, 15
      %v584 = vpop.permute.xlu0 %583
      %585 = vrot.lane.b32.xlu0 %v417, 15
      %v586 = vpop.permute.xlu0 %585
      %vm587 = vcmp.lt.s32.totalorder %v439, 15
      %v588 = vsel %vm587, %v572, %v580
      %v589 = vsel %vm587, %v574, %v582
      %v590 = vsel %vm587, %v576, %v584
      %v591 = vsel %vm587, %v578, %v586
      %v592 = vsel %vm587, %v580, %v572
      %v593 = vsel %vm587, %v582, %v574
      %v594 = vsel %vm587, %v584, %v576
      %v595 = vsel %vm587, %v586, %v578
      %596 = vset.pattern.permute.xlu0 2
      %597 = vperm.xlu0 %596, %v418
      %v598 = vpop.permute.xlu0 %597
      %600 = vset.pattern.permute.xlu0 2
      %601 = vperm.xlu0 %600, %v419
      %v602 = vpop.permute.xlu0 %601
      %604 = vset.pattern.permute.xlu0 2
      %605 = vperm.xlu0 %604, %v420
      %v606 = vpop.permute.xlu0 %605
      %608 = vset.pattern.permute.xlu0 2
      %609 = vperm.xlu0 %608, %v421
      %v610 = vpop.permute.xlu0 %609
      %v612 = vmul.f32 %v592, %v598
      %v613 = vmul.f32 %v588, %v598
      %v614 = vmul.f32 %v593, %v602
      %v615 = vmul.f32 %v589, %v602
      %v616 = vmul.f32 %v594, %v606
      %v617 = vmul.f32 %v590, %v606
      %v618 = vmul.f32 %v595, %v610
      %v619 = vmul.f32 %v591, %v610
      %s620 = scalar_lea.vmem %s7, 2
      %v621 = vld [vmem:[%s620] ss:$8 sm:$0x3]
      %v623 = vperm.slane %v621, 0
      %v624 = vperm.slane %v621, 1
      %v627 = vmul.f32 %v612, %v623
      %v628 = vmul.f32 %v613, %v624
      %v629 = vmul.f32 %v614, %v623
      %v630 = vmul.f32 %v615, %v624
      %v631 = vmul.f32 %v616, %v623
      %v632 = vmul.f32 %v617, %v624
      %v633 = vmul.f32 %v618, %v623
      %v634 = vmul.f32 %v619, %v624
      %v635 = vadd.f32 %v563, %v627
      %v636 = vadd.f32 %v564, %v628
      %v637 = vadd.f32 %v565, %v629
      %v638 = vadd.f32 %v566, %v630
      %v639 = vadd.f32 %v567, %v631
      %v640 = vadd.f32 %v568, %v632
      %v641 = vadd.f32 %v569, %v633
      %v642 = vadd.f32 %v570, %v634
      %643 = vrot.lane.b32.xlu0 %v410, 1
      %v644 = vpop.permute.xlu0 %643
      %645 = vrot.lane.b32.xlu0 %v412, 1
      %v646 = vpop.permute.xlu0 %645
      %647 = vrot.lane.b32.xlu0 %v414, 1
      %v648 = vpop.permute.xlu0 %647
      %649 = vrot.lane.b32.xlu0 %v416, 1
      %v650 = vpop.permute.xlu0 %649
      %651 = vrot.lane.b32.xlu0 %v411, 1
      %v652 = vpop.permute.xlu0 %651
      %653 = vrot.lane.b32.xlu0 %v413, 1
      %v654 = vpop.permute.xlu0 %653
      %655 = vrot.lane.b32.xlu0 %v415, 1
      %v656 = vpop.permute.xlu0 %655
      %657 = vrot.lane.b32.xlu0 %v417, 1
      %v658 = vpop.permute.xlu0 %657
      %vm659 = vcmp.lt.s32.totalorder %v439, 1
      %v660 = vsel %vm659, %v644, %v652
      %v661 = vsel %vm659, %v646, %v654
      %v662 = vsel %vm659, %v648, %v656
      %v663 = vsel %vm659, %v650, %v658
      %v664 = vsel %vm659, %v652, %v644
      %v665 = vsel %vm659, %v654, %v646
      %v666 = vsel %vm659, %v656, %v648
      %v667 = vsel %vm659, %v658, %v650
      %668 = vset.pattern.permute.xlu0 3
      %669 = vperm.xlu0 %668, %v418
      %v670 = vpop.permute.xlu0 %669
      %672 = vset.pattern.permute.xlu0 3
      %673 = vperm.xlu0 %672, %v419
      %v674 = vpop.permute.xlu0 %673
      %676 = vset.pattern.permute.xlu0 3
      %677 = vperm.xlu0 %676, %v420
      %v678 = vpop.permute.xlu0 %677
      %680 = vset.pattern.permute.xlu0 3
      %681 = vperm.xlu0 %680, %v421
      %v682 = vpop.permute.xlu0 %681
      %v684 = vmul.f32 %v664, %v670
      %v685 = vmul.f32 %v660, %v670
      %v686 = vmul.f32 %v665, %v674
      %v687 = vmul.f32 %v661, %v674
      %v688 = vmul.f32 %v666, %v678
      %v689 = vmul.f32 %v662, %v678
      %v690 = vmul.f32 %v667, %v682
      %v691 = vmul.f32 %v663, %v682
      %s692 = scalar_lea.vmem %s7, 3
      %v693 = vld [vmem:[%s692] ss:$8 sm:$0x3]
      %v695 = vperm.slane %v693, 0
      %v696 = vperm.slane %v693, 1
      %v699 = vmul.f32 %v684, %v695
      %v700 = vmul.f32 %v685, %v696
      %v701 = vmul.f32 %v686, %v695
      %v702 = vmul.f32 %v687, %v696
      %v703 = vmul.f32 %v688, %v695
      %v704 = vmul.f32 %v689, %v696
      %v705 = vmul.f32 %v690, %v695
      %v706 = vmul.f32 %v691, %v696
      %v707 = vadd.f32 %v635, %v699
      %v708 = vadd.f32 %v636, %v700
      %v709 = vadd.f32 %v637, %v701
      %v710 = vadd.f32 %v638, %v702
      %v711 = vadd.f32 %v639, %v703
      %v712 = vadd.f32 %v640, %v704
      %v713 = vadd.f32 %v641, %v705
      %v714 = vadd.f32 %v642, %v706
      %715 = vset.pattern.permute.xlu0 4
      %716 = vperm.xlu0 %715, %v418
      %v717 = vpop.permute.xlu0 %716
      %719 = vset.pattern.permute.xlu0 4
      %720 = vperm.xlu0 %719, %v419
      %v721 = vpop.permute.xlu0 %720
      %723 = vset.pattern.permute.xlu0 4
      %724 = vperm.xlu0 %723, %v420
      %v725 = vpop.permute.xlu0 %724
      %727 = vset.pattern.permute.xlu0 4
      %728 = vperm.xlu0 %727, %v421
      %v729 = vpop.permute.xlu0 %728
      %v731 = vmul.f32 %v410, %v717
      %v732 = vmul.f32 %v411, %v717
      %v733 = vmul.f32 %v412, %v721
      %v734 = vmul.f32 %v413, %v721
      %v735 = vmul.f32 %v414, %v725
      %v736 = vmul.f32 %v415, %v725
      %v737 = vmul.f32 %v416, %v729
      %v738 = vmul.f32 %v417, %v729
      %v739 = vadd.f32 %v707, %v731
      %v740 = vadd.f32 %v708, %v732
      %v741 = vadd.f32 %v709, %v733
      %v742 = vadd.f32 %v710, %v734
      %v743 = vadd.f32 %v711, %v735
      %v744 = vadd.f32 %v712, %v736
      %v745 = vadd.f32 %v713, %v737
      %v746 = vadd.f32 %v714, %v738
      %747 = vrot.lane.b32.xlu0 %v410, 127
      %v748 = vpop.permute.xlu0 %747
      %749 = vrot.lane.b32.xlu0 %v412, 127
      %v750 = vpop.permute.xlu0 %749
      %751 = vrot.lane.b32.xlu0 %v414, 127
      %v752 = vpop.permute.xlu0 %751
      %753 = vrot.lane.b32.xlu0 %v416, 127
      %v754 = vpop.permute.xlu0 %753
      %755 = vrot.lane.b32.xlu0 %v411, 127
      %v756 = vpop.permute.xlu0 %755
      %757 = vrot.lane.b32.xlu0 %v413, 127
      %v758 = vpop.permute.xlu0 %757
      %759 = vrot.lane.b32.xlu0 %v415, 127
      %v760 = vpop.permute.xlu0 %759
      %761 = vrot.lane.b32.xlu0 %v417, 127
      %v762 = vpop.permute.xlu0 %761
      %vm763 = vcmp.lt.s32.totalorder %v439, 127
      %v764 = vsel %vm763, %v748, %v756
      %v765 = vsel %vm763, %v750, %v758
      %v766 = vsel %vm763, %v752, %v760
      %v767 = vsel %vm763, %v754, %v762
      %v768 = vsel %vm763, %v756, %v748
      %v769 = vsel %vm763, %v758, %v750
      %v770 = vsel %vm763, %v760, %v752
      %v771 = vsel %vm763, %v762, %v754
      %772 = vset.pattern.permute.xlu0 5
      %773 = vperm.xlu0 %772, %v418
      %v774 = vpop.permute.xlu0 %773
      %776 = vset.pattern.permute.xlu0 5
      %777 = vperm.xlu0 %776, %v419
      %v778 = vpop.permute.xlu0 %777
      %780 = vset.pattern.permute.xlu0 5
      %781 = vperm.xlu0 %780, %v420
      %v782 = vpop.permute.xlu0 %781
      %784 = vset.pattern.permute.xlu0 5
      %785 = vperm.xlu0 %784, %v421
      %v786 = vpop.permute.xlu0 %785
      %v788 = vmul.f32 %v764, %v774
      %v789 = vmul.f32 %v768, %v774
      %v790 = vmul.f32 %v765, %v778
      %v791 = vmul.f32 %v769, %v778
      %v792 = vmul.f32 %v766, %v782
      %v793 = vmul.f32 %v770, %v782
      %v794 = vmul.f32 %v767, %v786
      %v795 = vmul.f32 %v771, %v786
      %s796 = scalar_lea.vmem %s7, 5
      %v797 = vld [vmem:[%s796] ss:$8 sm:$0x3]
      %v799 = vperm.slane %v797, 0
      %v800 = vperm.slane %v797, 1
      %v803 = vmul.f32 %v788, %v799
      %v804 = vmul.f32 %v789, %v800
      %v805 = vmul.f32 %v790, %v799
      %v806 = vmul.f32 %v791, %v800
      %v807 = vmul.f32 %v792, %v799
      %v808 = vmul.f32 %v793, %v800
      %v809 = vmul.f32 %v794, %v799
      %v810 = vmul.f32 %v795, %v800
      %v811 = vadd.f32 %v739, %v803
      %v812 = vadd.f32 %v740, %v804
      %v813 = vadd.f32 %v741, %v805
      %v814 = vadd.f32 %v742, %v806
      %v815 = vadd.f32 %v743, %v807
      %v816 = vadd.f32 %v744, %v808
      %v817 = vadd.f32 %v745, %v809
      %v818 = vadd.f32 %v746, %v810
      %819 = vrot.lane.b32.xlu0 %v410, 113
      %v820 = vpop.permute.xlu0 %819
      %821 = vrot.lane.b32.xlu0 %v412, 113
      %v822 = vpop.permute.xlu0 %821
      %823 = vrot.lane.b32.xlu0 %v414, 113
      %v824 = vpop.permute.xlu0 %823
      %825 = vrot.lane.b32.xlu0 %v416, 113
      %v826 = vpop.permute.xlu0 %825
      %827 = vrot.lane.b32.xlu0 %v411, 113
      %v828 = vpop.permute.xlu0 %827
      %829 = vrot.lane.b32.xlu0 %v413, 113
      %v830 = vpop.permute.xlu0 %829
      %831 = vrot.lane.b32.xlu0 %v415, 113
      %v832 = vpop.permute.xlu0 %831
      %833 = vrot.lane.b32.xlu0 %v417, 113
      %v834 = vpop.permute.xlu0 %833
      %vm835 = vcmp.lt.s32.totalorder %v439, 113
      %v836 = vsel %vm835, %v820, %v828
      %v837 = vsel %vm835, %v822, %v830
      %v838 = vsel %vm835, %v824, %v832
      %v839 = vsel %vm835, %v826, %v834
      %v840 = vsel %vm835, %v828, %v820
      %v841 = vsel %vm835, %v830, %v822
      %v842 = vsel %vm835, %v832, %v824
      %v843 = vsel %vm835, %v834, %v826
      %844 = vset.pattern.permute.xlu0 6
      %845 = vperm.xlu0 %844, %v418
      %v846 = vpop.permute.xlu0 %845
      %848 = vset.pattern.permute.xlu0 6
      %849 = vperm.xlu0 %848, %v419
      %v850 = vpop.permute.xlu0 %849
      %852 = vset.pattern.permute.xlu0 6
      %853 = vperm.xlu0 %852, %v420
      %v854 = vpop.permute.xlu0 %853
      %856 = vset.pattern.permute.xlu0 6
      %857 = vperm.xlu0 %856, %v421
      %v858 = vpop.permute.xlu0 %857
      %v860 = vmul.f32 %v836, %v846
      %v861 = vmul.f32 %v840, %v846
      %v862 = vmul.f32 %v837, %v850
      %v863 = vmul.f32 %v841, %v850
      %v864 = vmul.f32 %v838, %v854
      %v865 = vmul.f32 %v842, %v854
      %v866 = vmul.f32 %v839, %v858
      %v867 = vmul.f32 %v843, %v858
      %s868 = scalar_lea.vmem %s7, 6
      %v869 = vld [vmem:[%s868] ss:$8 sm:$0x3]
      %v871 = vperm.slane %v869, 0
      %v872 = vperm.slane %v869, 1
      %v875 = vmul.f32 %v860, %v871
      %v876 = vmul.f32 %v861, %v872
      %v877 = vmul.f32 %v862, %v871
      %v878 = vmul.f32 %v863, %v872
      %v879 = vmul.f32 %v864, %v871
      %v880 = vmul.f32 %v865, %v872
      %v881 = vmul.f32 %v866, %v871
      %v882 = vmul.f32 %v867, %v872
      %v883 = vadd.f32 %v811, %v875
      %v884 = vadd.f32 %v812, %v876
      %v885 = vadd.f32 %v813, %v877
      %v886 = vadd.f32 %v814, %v878
      %v887 = vadd.f32 %v815, %v879
      %v888 = vadd.f32 %v816, %v880
      %v889 = vadd.f32 %v817, %v881
      %v890 = vadd.f32 %v818, %v882
      %891 = vrot.lane.b32.xlu0 %v410, 112
      %v892 = vpop.permute.xlu0 %891
      %893 = vrot.lane.b32.xlu0 %v412, 112
      %v894 = vpop.permute.xlu0 %893
      %895 = vrot.lane.b32.xlu0 %v414, 112
      %v896 = vpop.permute.xlu0 %895
      %897 = vrot.lane.b32.xlu0 %v416, 112
      %v898 = vpop.permute.xlu0 %897
      %899 = vrot.lane.b32.xlu0 %v411, 112
      %v900 = vpop.permute.xlu0 %899
      %901 = vrot.lane.b32.xlu0 %v413, 112
      %v902 = vpop.permute.xlu0 %901
      %903 = vrot.lane.b32.xlu0 %v415, 112
      %v904 = vpop.permute.xlu0 %903
      %905 = vrot.lane.b32.xlu0 %v417, 112
      %v906 = vpop.permute.xlu0 %905
      %vm907 = vcmp.lt.s32.totalorder %v439, 112
      %v908 = vsel %vm907, %v892, %v900
      %v909 = vsel %vm907, %v894, %v902
      %v910 = vsel %vm907, %v896, %v904
      %v911 = vsel %vm907, %v898, %v906
      %v912 = vsel %vm907, %v900, %v892
      %v913 = vsel %vm907, %v902, %v894
      %v914 = vsel %vm907, %v904, %v896
      %v915 = vsel %vm907, %v906, %v898
      %916 = vset.pattern.permute.xlu0 7
      %917 = vperm.xlu0 %916, %v418
      %v918 = vpop.permute.xlu0 %917
      %920 = vset.pattern.permute.xlu0 7
      %921 = vperm.xlu0 %920, %v419
      %v922 = vpop.permute.xlu0 %921
      %924 = vset.pattern.permute.xlu0 7
      %925 = vperm.xlu0 %924, %v420
      %v926 = vpop.permute.xlu0 %925
      %928 = vset.pattern.permute.xlu0 7
      %929 = vperm.xlu0 %928, %v421
      %v930 = vpop.permute.xlu0 %929
      %v932 = vmul.f32 %v908, %v918
      %v933 = vmul.f32 %v912, %v918
      %v934 = vmul.f32 %v909, %v922
      %v935 = vmul.f32 %v913, %v922
      %v936 = vmul.f32 %v910, %v926
      %v937 = vmul.f32 %v914, %v926
      %v938 = vmul.f32 %v911, %v930
      %v939 = vmul.f32 %v915, %v930
      %s940 = scalar_lea.vmem %s7, 7
      %v941 = vld [vmem:[%s940] ss:$8 sm:$0x3]
      %v943 = vperm.slane %v941, 0
      %v944 = vperm.slane %v941, 1
      %v947 = vmul.f32 %v932, %v943
      %v948 = vmul.f32 %v933, %v944
      %v949 = vmul.f32 %v934, %v943
      %v950 = vmul.f32 %v935, %v944
      %v951 = vmul.f32 %v936, %v943
      %v952 = vmul.f32 %v937, %v944
      %v953 = vmul.f32 %v938, %v943
      %v954 = vmul.f32 %v939, %v944
      %v955 = vadd.f32 %v883, %v947
      %v956 = vadd.f32 %v884, %v948
      %v957 = vadd.f32 %v885, %v949
      %v958 = vadd.f32 %v886, %v950
      %v959 = vadd.f32 %v887, %v951
      %v960 = vadd.f32 %v888, %v952
      %v961 = vadd.f32 %v889, %v953
      %v962 = vadd.f32 %v890, %v954
      %963 = vrot.lane.b32.xlu0 %v410, 111
      %v964 = vpop.permute.xlu0 %963
      %965 = vrot.lane.b32.xlu0 %v412, 111
      %v966 = vpop.permute.xlu0 %965
      %967 = vrot.lane.b32.xlu0 %v414, 111
      %v968 = vpop.permute.xlu0 %967
      %969 = vrot.lane.b32.xlu0 %v416, 111
      %v970 = vpop.permute.xlu0 %969
      %971 = vrot.lane.b32.xlu0 %v411, 111
      %v972 = vpop.permute.xlu0 %971
      %973 = vrot.lane.b32.xlu0 %v413, 111
      %v974 = vpop.permute.xlu0 %973
      %975 = vrot.lane.b32.xlu0 %v415, 111
      %v976 = vpop.permute.xlu0 %975
      %977 = vrot.lane.b32.xlu0 %v417, 111
      %v978 = vpop.permute.xlu0 %977
      %vm979 = vcmp.lt.s32.totalorder %v439, 111
      %v980 = vsel %vm979, %v964, %v972
      %v981 = vsel %vm979, %v966, %v974
      %v982 = vsel %vm979, %v968, %v976
      %v983 = vsel %vm979, %v970, %v978
      %v984 = vsel %vm979, %v972, %v964
      %v985 = vsel %vm979, %v974, %v966
      %v986 = vsel %vm979, %v976, %v968
      %v987 = vsel %vm979, %v978, %v970
      %988 = vset.pattern.permute.xlu0 8
      %989 = vperm.xlu0 %988, %v418
      %v990 = vpop.permute.xlu0 %989
      %992 = vset.pattern.permute.xlu0 8
      %993 = vperm.xlu0 %992, %v419
      %v994 = vpop.permute.xlu0 %993
      %996 = vset.pattern.permute.xlu0 8
      %997 = vperm.xlu0 %996, %v420
      %v998 = vpop.permute.xlu0 %997
      %1000 = vset.pattern.permute.xlu0 8
      %1001 = vperm.xlu0 %1000, %v421
      %v1002 = vpop.permute.xlu0 %1001
      %v1004 = vmul.f32 %v980, %v990
      %v1005 = vmul.f32 %v984, %v990
      %v1006 = vmul.f32 %v981, %v994
      %v1007 = vmul.f32 %v985, %v994
      %v1008 = vmul.f32 %v982, %v998
      %v1009 = vmul.f32 %v986, %v998
      %v1010 = vmul.f32 %v983, %v1002
      %v1011 = vmul.f32 %v987, %v1002
      %s1012 = scalar_lea.vmem %s7, 16
      %v1013 = vld [vmem:[%s1012] ss:$8 sm:$0x3]
      %v1015 = vperm.slane %v1013, 0
      %v1016 = vperm.slane %v1013, 1
      %v1019 = vmul.f32 %v1004, %v1015
      %v1020 = vmul.f32 %v1005, %v1016
      %v1021 = vmul.f32 %v1006, %v1015
      %v1022 = vmul.f32 %v1007, %v1016
      %v1023 = vmul.f32 %v1008, %v1015
      %v1024 = vmul.f32 %v1009, %v1016
      %v1025 = vmul.f32 %v1010, %v1015
      %v1026 = vmul.f32 %v1011, %v1016
      %v1027 = vadd.f32 %v955, %v1019
      %v1028 = vadd.f32 %v956, %v1020
      %v1029 = vadd.f32 %v957, %v1021
      %v1030 = vadd.f32 %v958, %v1022
      %v1031 = vadd.f32 %v959, %v1023
      %v1032 = vadd.f32 %v960, %v1024
      %v1033 = vadd.f32 %v961, %v1025
      %v1034 = vadd.f32 %v962, %v1026
      %v1035 = vld [vmem:[%s4] sm:$0xf]
      %v1036 = vld [vmem:[%s4 + $0x4] sm:$0xf]
      %v1037 = vld [vmem:[%s4 + $0x8] sm:$0xf]
      %v1038 = vld [vmem:[%s4 + $0xc] sm:$0xf]
      %v1039 = vld [vmem:[%s4 + $0x10] sm:$0xf]
      %v1040 = vld [vmem:[%s4 + $0x14] sm:$0xf]
      %v1041 = vld [vmem:[%s4 + $0x18] sm:$0xf]
      %v1042 = vld [vmem:[%s4 + $0x1c] sm:$0xf]
      %v1043 = vpack.c.bf16 %v1029, %v1027
      %v1044 = vpack.c.bf16 %v1030, %v1028
      %v1045 = vpack.c.bf16 %v1033, %v1031
      %v1046 = vpack.c.bf16 %v1034, %v1032
      %v1047 = vld [vmem:[%s5] sm:$0xff]
      %v1048 = vld [vmem:[%s5 + $0x8] sm:$0xff]
      %v1049 = vld [vmem:[%s5 + $0x10] sm:$0xff]
      %v1050 = vld [vmem:[%s5 + $0x18] sm:$0xff]
      %v1051 = vld [vmem:[%s5 + $0x20] sm:$0xff]
      %v1052 = vld [vmem:[%s5 + $0x28] sm:$0xff]
      %v1053 = vld [vmem:[%s5 + $0x30] sm:$0xff]
      %v1054 = vld [vmem:[%s5 + $0x38] sm:$0xff]
      %1056 = vset.pattern.permute.xlu0 0
      %1057 = vperm.xlu0 %1056, %v1047
      %v1058 = vpop.permute.xlu0 %1057
      %1061 = vset.pattern.permute.xlu0 0
      %1062 = vperm.xlu0 %1061, %v1048
      %v1063 = vpop.permute.xlu0 %1062
      %1066 = vset.pattern.permute.xlu0 0
      %1067 = vperm.xlu0 %1066, %v1049
      %v1068 = vpop.permute.xlu0 %1067
      %1071 = vset.pattern.permute.xlu0 0
      %1072 = vperm.xlu0 %1071, %v1050
      %v1073 = vpop.permute.xlu0 %1072
      %1076 = vset.pattern.permute.xlu0 0
      %1077 = vperm.xlu0 %1076, %v1051
      %v1078 = vpop.permute.xlu0 %1077
      %1081 = vset.pattern.permute.xlu0 0
      %1082 = vperm.xlu0 %1081, %v1052
      %v1083 = vpop.permute.xlu0 %1082
      %1086 = vset.pattern.permute.xlu0 0
      %1087 = vperm.xlu0 %1086, %v1053
      %v1088 = vpop.permute.xlu0 %1087
      %1091 = vset.pattern.permute.xlu0 0
      %1092 = vperm.xlu0 %1091, %v1054
      %v1093 = vpop.permute.xlu0 %1092
      %v1103 = vunpack.c.l.b16 %v1035
      %v1104 = vunpack.c.l.b16 %v1036
      %v1105 = vunpack.c.l.b16 %v1037
      %v1106 = vunpack.c.l.b16 %v1038
      %v1107 = vunpack.c.l.b16 %v1039
      %v1108 = vunpack.c.l.b16 %v1040
      %v1109 = vunpack.c.l.b16 %v1041
      %v1110 = vunpack.c.l.b16 %v1042
      %v1111 = vpack.c.b16 %v1104, %v1103
      %v1112 = vpack.c.b16 %v1106, %v1105
      %v1113 = vpack.c.b16 %v1108, %v1107
      %v1114 = vpack.c.b16 %v1110, %v1109
      %v1116 = vsel %vm365, %v1111, 0
      %v1119 = vsel %vm365, %v1112, 0
      %v1122 = vsel %vm365, %v1113, 0
      %v1125 = vsel %vm365, %v1114, 0
      %1127 = vmatpush.bf16.msra.mxu0 0
      %1128 = vmatpush.bf16.msra.mxu0 0
      %1129 = vmatpush.bf16.msra.mxu0 0
      %1130 = vmatpush.bf16.msra.mxu0 0
      %1131 = vmatpush.bf16.msra.mxu0 0
      %1132 = vmatpush.bf16.msra.mxu0 0
      %1133 = vmatpush.bf16.msra.mxu0 %v1045
      %1134 = vmatpush.bf16.msra.mxu0 %v1043
      %1135 = vmatmul.bf16.gmra.mxu0 %v1116
      %v1136 = vpop.f32.mrf.mxu0
      %v1137 = vadd.f32 %v1058, %v1136
      %v1138 = vpop.f32.mrf.mxu0
      %v1139 = vadd.f32 %v1063, %v1138
      %1140 = vmatmul.bf16.gmra.mxu0 %v1119
      %v1141 = vpop.f32.mrf.mxu0
      %v1142 = vadd.f32 %v1068, %v1141
      %v1143 = vpop.f32.mrf.mxu0
      %v1144 = vadd.f32 %v1073, %v1143
      %1145 = vmatmul.bf16.gmra.mxu0 %v1122
      %v1146 = vpop.f32.mrf.mxu0
      %v1147 = vadd.f32 %v1078, %v1146
      %v1148 = vpop.f32.mrf.mxu0
      %v1149 = vadd.f32 %v1083, %v1148
      %1150 = vmatmul.bf16.gmra.mxu0 %v1125
      %v1151 = vpop.f32.mrf.mxu0
      %v1152 = vadd.f32 %v1088, %v1151
      %v1153 = vpop.f32.mrf.mxu0
      %v1154 = vadd.f32 %v1093, %v1153
      %1155 = vdwg.mxu0
      %1156 = vmatpush.bf16.msra.mxu0 0
      %1157 = vmatpush.bf16.msra.mxu0 0
      %1158 = vmatpush.bf16.msra.mxu0 0
      %1159 = vmatpush.bf16.msra.mxu0 0
      %1160 = vmatpush.bf16.msra.mxu0 0
      %1161 = vmatpush.bf16.msra.mxu0 0
      %1162 = vmatpush.bf16.msra.mxu0 %v1046
      %1163 = vmatpush.bf16.msra.mxu0 %v1044
      %1164 = vmatmul.bf16.gmra.mxu0 %v1116
      %v1165 = vpop.f32.mrf.mxu0
      %v1166 = vadd.f32 %v1058, %v1165
      %v1167 = vpop.f32.mrf.mxu0
      %v1168 = vadd.f32 %v1063, %v1167
      %1169 = vmatmul.bf16.gmra.mxu0 %v1119
      %v1170 = vpop.f32.mrf.mxu0
      %v1171 = vadd.f32 %v1068, %v1170
      %v1172 = vpop.f32.mrf.mxu0
      %v1173 = vadd.f32 %v1073, %v1172
      %1174 = vmatmul.bf16.gmra.mxu0 %v1122
      %v1175 = vpop.f32.mrf.mxu0
      %v1176 = vadd.f32 %v1078, %v1175
      %v1177 = vpop.f32.mrf.mxu0
      %v1178 = vadd.f32 %v1083, %v1177
      %1179 = vmatmul.bf16.gmra.mxu0 %v1125
      %v1180 = vpop.f32.mrf.mxu0
      %v1181 = vadd.f32 %v1088, %v1180
      %v1182 = vpop.f32.mrf.mxu0
      %v1183 = vadd.f32 %v1093, %v1182
      %1184 = vdwg.mxu0
      %v1185 = vmax.f32 %v1137, 0.0
      %v1186 = vmax.f32 %v1166, 0.0
      %v1187 = vmax.f32 %v1139, 0.0
      %v1188 = vmax.f32 %v1168, 0.0
      %v1189 = vmax.f32 %v1142, 0.0
      %v1190 = vmax.f32 %v1171, 0.0
      %v1191 = vmax.f32 %v1144, 0.0
      %v1192 = vmax.f32 %v1173, 0.0
      %v1193 = vmax.f32 %v1147, 0.0
      %v1194 = vmax.f32 %v1176, 0.0
      %v1195 = vmax.f32 %v1149, 0.0
      %v1196 = vmax.f32 %v1178, 0.0
      %v1197 = vmax.f32 %v1152, 0.0
      %v1198 = vmax.f32 %v1181, 0.0
      %v1199 = vmax.f32 %v1154, 0.0
      %v1200 = vmax.f32 %v1183, 0.0
      %v1201 = vld [vmem:[%s6] sm:$0xff]
      %v1202 = vld [vmem:[%s6 + $0x8] sm:$0xff]
      %v1203 = vld [vmem:[%s6 + $0x10] sm:$0xff]
      %v1204 = vld [vmem:[%s6 + $0x18] sm:$0xff]
      %v1205 = vld [vmem:[%s6 + $0x20] sm:$0xff]
      %v1206 = vld [vmem:[%s6 + $0x28] sm:$0xff]
      %v1207 = vld [vmem:[%s6 + $0x30] sm:$0xff]
      %v1208 = vld [vmem:[%s6 + $0x38] sm:$0xff]
      %v1210 = vsel %vm365, %v1201, 0
      %v1213 = vsel %vm365, %v1202, 0
      %v1216 = vsel %vm365, %v1203, 0
      %v1219 = vsel %vm365, %v1204, 0
      %v1222 = vsel %vm365, %v1205, 0
      %v1225 = vsel %vm365, %v1206, 0
      %v1228 = vsel %vm365, %v1207, 0
      %v1231 = vsel %vm365, %v1208, 0
      %1233 = vmatpush.msra.mxu0 0.0
      %1234 = vmatpush.msra.mxu0 0.0
      %1235 = vmatpush.msra.mxu0 0.0
      %1236 = vmatpush.msra.mxu0 0.0
      %1237 = vmatpush.msra.mxu0 0.0
      %1238 = vmatpush.msra.mxu0 0.0
      %1239 = vmatpush.msra.mxu0 0.0
      %1240 = vmatpush.msra.mxu0 0.0
      %1241 = vmatpush.msra.mxu0 0.0
      %1242 = vmatpush.msra.mxu0 0.0
      %1243 = vmatpush.msra.mxu0 0.0
      %1244 = vmatpush.msra.mxu0 0.0
      %1245 = vmatpush.msra.mxu0 %v321
      %1246 = vmatpush.msra.mxu0 %v319
      %1247 = vmatpush.msra.mxu0 %v317
      %1248 = vmatpush.msra.mxu0 %v315
      %1249 = vmatmul.f32.gmra.mxu0 %v1210
      %v1250 = vpop.f32.mrf.mxu0
      %v1251 = vadd.f32 0.0, %v1250
      %1252 = vmatmul.f32.gmra.mxu0 %v1213
      %v1253 = vpop.f32.mrf.mxu0
      %v1254 = vadd.f32 0.0, %v1253
      %1255 = vmatmul.f32.gmra.mxu0 %v1216
      %v1256 = vpop.f32.mrf.mxu0
      %v1257 = vadd.f32 0.0, %v1256
      %1258 = vmatmul.f32.gmra.mxu0 %v1219
      %v1259 = vpop.f32.mrf.mxu0
      %v1260 = vadd.f32 0.0, %v1259
      %1261 = vmatmul.f32.gmra.mxu0 %v1222
      %v1262 = vpop.f32.mrf.mxu0
      %v1263 = vadd.f32 0.0, %v1262
      %1264 = vmatmul.f32.gmra.mxu0 %v1225
      %v1265 = vpop.f32.mrf.mxu0
      %v1266 = vadd.f32 0.0, %v1265
      %1267 = vmatmul.f32.gmra.mxu0 %v1228
      %v1268 = vpop.f32.mrf.mxu0
      %v1269 = vadd.f32 0.0, %v1268
      %1270 = vmatmul.f32.gmra.mxu0 %v1231
      %v1271 = vpop.f32.mrf.mxu0
      %v1272 = vadd.f32 0.0, %v1271
      %1273 = vdwg.mxu0
      %1274 = vmatpush.msra.mxu0 0.0
      %1275 = vmatpush.msra.mxu0 0.0
      %1276 = vmatpush.msra.mxu0 0.0
      %1277 = vmatpush.msra.mxu0 0.0
      %1278 = vmatpush.msra.mxu0 0.0
      %1279 = vmatpush.msra.mxu0 0.0
      %1280 = vmatpush.msra.mxu0 0.0
      %1281 = vmatpush.msra.mxu0 0.0
      %1282 = vmatpush.msra.mxu0 0.0
      %1283 = vmatpush.msra.mxu0 0.0
      %1284 = vmatpush.msra.mxu0 0.0
      %1285 = vmatpush.msra.mxu0 0.0
      %1286 = vmatpush.msra.mxu0 %v322
      %1287 = vmatpush.msra.mxu0 %v320
      %1288 = vmatpush.msra.mxu0 %v318
      %1289 = vmatpush.msra.mxu0 %v316
      %1290 = vmatmul.f32.gmra.mxu0 %v1210
      %v1291 = vpop.f32.mrf.mxu0
      %v1292 = vadd.f32 0.0, %v1291
      %1293 = vmatmul.f32.gmra.mxu0 %v1213
      %v1294 = vpop.f32.mrf.mxu0
      %v1295 = vadd.f32 0.0, %v1294
      %1296 = vmatmul.f32.gmra.mxu0 %v1216
      %v1297 = vpop.f32.mrf.mxu0
      %v1298 = vadd.f32 0.0, %v1297
      %1299 = vmatmul.f32.gmra.mxu0 %v1219
      %v1300 = vpop.f32.mrf.mxu0
      %v1301 = vadd.f32 0.0, %v1300
      %1302 = vmatmul.f32.gmra.mxu0 %v1222
      %v1303 = vpop.f32.mrf.mxu0
      %v1304 = vadd.f32 0.0, %v1303
      %1305 = vmatmul.f32.gmra.mxu0 %v1225
      %v1306 = vpop.f32.mrf.mxu0
      %v1307 = vadd.f32 0.0, %v1306
      %1308 = vmatmul.f32.gmra.mxu0 %v1228
      %v1309 = vpop.f32.mrf.mxu0
      %v1310 = vadd.f32 0.0, %v1309
      %1311 = vmatmul.f32.gmra.mxu0 %v1231
      %v1312 = vpop.f32.mrf.mxu0
      %v1313 = vadd.f32 0.0, %v1312
      %1314 = vdwg.mxu0
      %v1315 = vadd.f32 %v1185, %v1251
      %v1316 = vadd.f32 %v1186, %v1292
      %v1317 = vadd.f32 %v1187, %v1254
      %v1318 = vadd.f32 %v1188, %v1295
      %v1319 = vadd.f32 %v1189, %v1257
      %v1320 = vadd.f32 %v1190, %v1298
      %v1321 = vadd.f32 %v1191, %v1260
      %v1322 = vadd.f32 %v1192, %v1301
      %v1323 = vadd.f32 %v1193, %v1263
      %v1324 = vadd.f32 %v1194, %v1304
      %v1325 = vadd.f32 %v1195, %v1266
      %v1326 = vadd.f32 %v1196, %v1307
      %v1327 = vadd.f32 %v1197, %v1269
      %v1328 = vadd.f32 %v1198, %v1310
      %v1329 = vadd.f32 %v1199, %v1272
      %v1330 = vadd.f32 %v1200, %v1313
      %1331 = vst [vmem:[%s312] sm:$0xff] %v1315
      %1332 = vst [vmem:[%s312 + $0x8] sm:$0xff] %v1316
      %1333 = vst [vmem:[%s312 + $0x10] sm:$0xff] %v1317
      %1334 = vst [vmem:[%s312 + $0x18] sm:$0xff] %v1318
      %1335 = vst [vmem:[%s312 + $0x20] sm:$0xff] %v1319
      %1336 = vst [vmem:[%s312 + $0x28] sm:$0xff] %v1320
      %1337 = vst [vmem:[%s312 + $0x30] sm:$0xff] %v1321
      %1338 = vst [vmem:[%s312 + $0x38] sm:$0xff] %v1322
      %1339 = vst [vmem:[%s312 + $0x40] sm:$0xff] %v1323
      %1340 = vst [vmem:[%s312 + $0x48] sm:$0xff] %v1324
      %1341 = vst [vmem:[%s312 + $0x50] sm:$0xff] %v1325
      %1342 = vst [vmem:[%s312 + $0x58] sm:$0xff] %v1326
      %1343 = vst [vmem:[%s312 + $0x60] sm:$0xff] %v1327
      %1344 = vst [vmem:[%s312 + $0x68] sm:$0xff] %v1328
      %1345 = vst [vmem:[%s312 + $0x70] sm:$0xff] %v1329
      %1346 = vst [vmem:[%s312 + $0x78] sm:$0xff] %v1330
      %s1347 = smul.u32 8, %s19
      %p1348 = scmp.lt.s32.totalorder %s1347, 15
      %s1349 = scalar_select %p1348, %s1347, 15
      %s1350 = smul.addr %s1349, 2
      %s1351 = smul.addr %s1350, 8
      %s1352 = scalar_lea.vmem %s8, %s1351
      // Predicated region
      $region53: #{shufflenet_forward.1} parent=51 // pred_check
        %p1353 = pneg %p210
      $region54: #{shufflenet_forward.1} parent=51 // pred_check_branch
        %1355 = sbr.rel (%p1353) target = $region56
      $region55: #{shufflenet_forward.1} parent=51 // pred_region
        %s1356 = smul.u32 8, %s19
      $region56: #{shufflenet_forward.1} parent=51 // pred_fallthru
        _
    $region52: #{shufflenet_forward.1} parent=5 // pred_fallthru
      _
    %p1357 = scmp.le.s32.totalorder 2, %s14
    // Predicated region
    $region57: #{shufflenet_forward.1} parent=5 // pred_check
      %p1358 = pneg %p1357
    $region58: #{shufflenet_forward.1} parent=5 // pred_check_branch
      %1360 = sbr.rel (%p1358) target = $region60
    $region59: #{shufflenet_forward.1} parent=5 // pred_region
      %s1361 = ssub.s32 %s14, 2
      // Predicated region
      $region61: #{shufflenet_forward.1} parent=59 // pred_check
        %p1362 = pneg %p216
      $region62: #{shufflenet_forward.1} parent=59 // pred_check_branch
        %1364 = sbr.rel (%p1362) target = $region64
      $region63: #{shufflenet_forward.1} parent=59 // pred_region
        %s1365 = smul.u32 8, %s20
        %p1366 = scmp.lt.s32.totalorder %s1365, 15
        %s1367 = scalar_select %p1366, %s1365, 15
        %s1368 = smul.addr %s1367, 2
        %s1369 = smul.addr %s1368, 8
        %s1370 = scalar_lea.vmem %s8, %s1369
      $region64: #{shufflenet_forward.1} parent=59 // pred_fallthru
        _
    $region60: #{shufflenet_forward.1} parent=5 // pred_fallthru
      _
  $region6: #{shufflenet_forward.1} parent=0 // loop_footer
    %s18 = sadd.s32 1, %s14
  $region7: #{shufflenet_forward.1} parent=0 // loop_footer_branch
    %13 = sbr.rel target = $region3
  $region8: #{shufflenet_forward.1} parent=0 // loop_exit
    _

</llo_original>
